<compile_context>
chip_gen: v5e
topology: v5e:2x2
jax: 0.10.0
libtpu: 0.0.40
codegen_flags: <defaults>
</compile_context>

<pallas_src>
import jax
import jax.numpy as jnp
from jax import lax
from jax.experimental import pallas as pl
from jax.experimental.pallas import tpu as pltpu


# ----------------------------------------------------------------------------
# Fused kernel: all LSTM layers (both directions interleaved) + classifier head.
# ----------------------------------------------------------------------------
def _make_fused_kernel(L, B, H, num_layers):
    H2, H4, H6 = 2 * H, 4 * H, 6 * H

    def kernel(*refs):
        # refs layout:
        #   x_ref (L*B, 2*C)                       time-aligned doubled input
        #   per layer: wih (in,8H), whh_blk (2H,8H), b (1,8H)
        #   f_w_t (2H,32), f_b (1,32), d_w_t (32,n_classes), d_b (1,n_classes)
        #   out_ref (B, n_classes)
        #   scratch: seq_ref (L*B, 4H), gx_ref (L*B, 8H)
        idx = 0
        x_ref = refs[idx]; idx += 1
        lstm = []
        for _l in range(num_layers):
            lstm.append((refs[idx], refs[idx + 1], refs[idx + 2]))
            idx += 3
        fw_ref, fb_ref, dw_ref, db_ref = refs[idx:idx + 4]
        idx += 4
        out_ref = refs[idx]; idx += 1
        seq_ref = refs[idx]; idx += 1
        gx_ref = refs[idx]; idx += 1

        h_n = []                                  # PyTorch order: l0_fw, l0_bw, l1_fw, ...
        for l in range(num_layers):
            wih_ref, whh_ref, b_ref = lstm[l]
            is_last = (l == num_layers - 1)
            layer_in = x_ref[...] if l == 0 else seq_ref[...]

            # One fused, time-aligned input projection per layer (both directions,
            # all timesteps) -> gx row block t holds the full 8H pre-activation for
            # fw step t and bw step (L-1-t).
            gx_ref[...] = (jnp.dot(layer_in, wih_ref[...],
                                   preferred_element_type=jnp.float32)
                           + b_ref[...])
            whh = whh_ref[...]                    # (2H, 8H) block-structured

            h = jnp.zeros((B, H2), jnp.float32)   # [h_fw | h_bw]
            c = jnp.zeros((B, H2), jnp.float32)   # [c_fw | c_bw]
            # TODO(synk): switch to lax.fori_loop(..., unroll=4..8) once L exceeds a
            #             few dozen; full unroll is only appropriate at tiny L.
            for t in range(L):                    # both directions advance together
                tb = L - 1 - t
                gates = (gx_ref[t * B:(t + 1) * B, :]
                         + jnp.dot(h, whh, preferred_element_type=jnp.float32))
                # gate columns: [i_fw,i_bw, f_fw,f_bw, o_fw,o_bw, g_fw,g_bw]
                ifo = jax.nn.sigmoid(gates[:, :H6])     # 1 EUP launch (i,f,o both dirs)
                g = jnp.tanh(gates[:, H6:])             # 1 EUP launch (g both dirs)
                c = ifo[:, H2:H4] * c + ifo[:, :H2] * g
                h = ifo[:, H4:H6] * jnp.tanh(c)         # 1 EUP launch
                if not is_last:
                    # Doubled-seq layout, row block tau:
                    #   [h_fw(tau), h_bw(L-1-tau), h_fw(L-1-tau), h_bw(tau)]
                    # At iteration t we hold exactly [h_fw(t) | h_bw(L-1-t)]:
                    seq_ref[t * B:(t + 1) * B, :H2] = h
                    seq_ref[tb * B:(tb + 1) * B, H2:H4] = h

            h_n.append(h[:, :H])                  # final fw hidden  (h_n[2l])
            h_n.append(h[:, H:])                  # final bw hidden  (h_n[2l+1])

        # Classifier head epilogue.
        # TODO(synk): nn.Dropout(0.5) is identity in eval mode; training-mode
        #             stochastic dropout is not implemented.
        nl = num_layers
        inv = 1.0 / float(nl)
        mean_first = sum(h_n[:nl]) * inv          # mean over first num_layers h_n entries
        mean_last = sum(h_n[nl:]) * inv           # mean over last  num_layers h_n entries
        # feat = [mean_first | mean_last]; avoid the lane concat by splitting f_w rows.
        hid = (jnp.dot(mean_first, fw_ref[:H, :], preferred_element_type=jnp.float32)
               + jnp.dot(mean_last, fw_ref[H:, :], preferred_element_type=jnp.float32)
               + fb_ref[...])
        hid = jnp.maximum(hid, 0.0)
        out_ref[...] = (jnp.dot(hid, dw_ref[...], preferred_element_type=jnp.float32)
                        + db_ref[...])

    return kernel


# ----------------------------------------------------------------------------
# One-time parameter preprocessing: gate reorder, direction fusion, bias fusion,
# block packing of the recurrent weights -- all hoisted off the inference path.
# ----------------------------------------------------------------------------
def prepare_params(params, num_layers):
    H = params["lstm"][0][0]["w_hh"].shape[1]
    # PyTorch gate row order is (i, f, g, o); target per-direction order is (i, f, o, g).
    src_gate = [0, 1, 3, 2]

    def gate_block(w, k_src):            # rows of a PyTorch (4H, X) weight for one gate
        return w[k_src * H:(k_src + 1) * H, :]

    def fw_col(k):                       # target 8H column layout: gate-major, dir-inner
        return slice((2 * k + 0) * H, (2 * k + 1) * H)

    def bw_col(k):
        return slice((2 * k + 1) * H, (2 * k + 2) * H)

    prep = {"lstm": []}
    for l in range(num_layers):
        p_fw, p_bw = params["lstm"][l]
        in_size = p_fw["w_ih"].shape[1]

        # ---- fused, time-aligned input-projection weight ----------------------
        if l == 0:
            C = in_size
            wih = jnp.zeros((2 * C, 8 * H), jnp.float32)
            for k in range(4):
                ks = src_gate[k]
                # doubled x layout: rows 0:C <- x(t) (fw), rows C:2C <- x(L-1-t) (bw)
                wih = wih.at[0:C, fw_col(k)].set(
                    jnp.transpose(gate_block(p_fw["w_ih"], ks)).astype(jnp.float32))
                wih = wih.at[C:2 * C, bw_col(k)].set(
                    jnp.transpose(gate_block(p_bw["w_ih"], ks)).astype(jnp.float32))
        else:
            # doubled-seq layout (input columns of the next layer):
            #   0:H   = h_fw(t)      -> fw gates via w_ih_fw[:, 0:H]
            #   H:2H  = h_bw(L-1-t)  -> bw gates via w_ih_bw[:, H:2H]
            #   2H:3H = h_fw(L-1-t)  -> bw gates via w_ih_bw[:, 0:H]
            #   3H:4H = h_bw(t)      -> fw gates via w_ih_fw[:, H:2H]
            wih = jnp.zeros((4 * H, 8 * H), jnp.float32)
            for k in range(4):
                ks = src_gate[k]
                gw_fw = gate_block(p_fw["w_ih"], ks).astype(jnp.float32)   # (H, 2H)
                gw_bw = gate_block(p_bw["w_ih"], ks).astype(jnp.float32)
                wih = wih.at[0:H, fw_col(k)].set(jnp.transpose(gw_fw[:, 0:H]))
                wih = wih.at[3 * H:4 * H, fw_col(k)].set(jnp.transpose(gw_fw[:, H:2 * H]))
                wih = wih.at[H:2 * H, bw_col(k)].set(jnp.transpose(gw_bw[:, H:2 * H]))
                wih = wih.at[2 * H:3 * H, bw_col(k)].set(jnp.transpose(gw_bw[:, 0:H]))

        # ---- block-structured recurrent weight (one matmul drives both dirs) --
        whh = jnp.zeros((2 * H, 8 * H), jnp.float32)
        for k in range(4):
            ks = src_gate[k]
            whh = whh.at[0:H, fw_col(k)].set(
                jnp.transpose(gate_block(p_fw["w_hh"], ks)).astype(jnp.float32))
            whh = whh.at[H:2 * H, bw_col(k)].set(
                jnp.transpose(gate_block(p_bw["w_hh"], ks)).astype(jnp.float32))

        # ---- fused bias --------------------------------------------------------
        b = jnp.zeros((1, 8 * H), jnp.float32)
        bf = (p_fw["b_ih"] + p_fw["b_hh"]).astype(jnp.float32)
        bb = (p_bw["b_ih"] + p_bw["b_hh"]).astype(jnp.float32)
        for k in range(4):
            ks = src_gate[k]
            b = b.at[0, fw_col(k)].set(bf[ks * H:(ks + 1) * H])
            b = b.at[0, bw_col(k)].set(bb[ks * H:(ks + 1) * H])

        prep["lstm"].append(dict(wih=wih, whh=whh, b=b))

    prep["f_w_t"] = jnp.transpose(params["f_w"]).astype(jnp.float32)    # (2H, 32)
    prep["f_b"] = params["f_b"].reshape(1, -1).astype(jnp.float32)
    prep["d_w_t"] = jnp.transpose(params["d_w"]).astype(jnp.float32)    # (32, n_classes)
    prep["d_b"] = params["d_b"].reshape(1, -1).astype(jnp.float32)
    return prep


def forward(prep, x, num_layers, hidden_size):
    """x: (B, C, L) — same as the PyTorch module's input."""
    B, C, L = x.shape
    H = hidden_size
    n_classes = prep["d_w_t"].shape[1]

    # Time-aligned doubled input: row block t = [x(t) | x(L-1-t)], shape (L*B, 2C).
    # TODO(synk): for realistic ENCASE L, read x in-place via a BlockSpec index_map
    #             over L-chunks instead of this one-shot wrapper transform.
    x_tm = jnp.transpose(x, (2, 0, 1)).astype(jnp.float32)               # (L, B, C)
    x2 = jnp.concatenate([x_tm, x_tm[::-1]], axis=-1).reshape(L * B, 2 * C)

    args = [x2]
    for l in range(num_layers):
        p = prep["lstm"][l]
        args += [p["wih"], p["whh"], p["b"]]
    args += [prep["f_w_t"], prep["f_b"], prep["d_w_t"], prep["d_b"]]

    vmem = pl.BlockSpec(memory_space=pltpu.MemorySpace.VMEM)
    return pl.pallas_call(
        _make_fused_kernel(L=L, B=B, H=H, num_layers=num_layers),
        out_shape=jax.ShapeDtypeStruct((B, n_classes), jnp.float32),
        in_specs=[vmem] * len(args),
        out_specs=vmem,
        scratch_shapes=[pltpu.VMEM((L * B, 4 * H), jnp.float32),   # layer output sequence
                        pltpu.VMEM((L * B, 8 * H), jnp.float32)],  # per-layer gx
    )(*args)


# ----------------------------------------------------------------------------
# Parameter init (deterministic, PyTorch-shaped).
# ----------------------------------------------------------------------------
def init_params(key, input_size, hidden_size, n_classes, num_layers):
    H = hidden_size
    scale = 1.0 / jnp.sqrt(jnp.float32(H))
    params = {"lstm": []}
    for l in range(num_layers):
        in_size = input_size if l == 0 else 2 * H
        dirs = []
        for _d in range(2):  # 0 = forward, 1 = backward
            key, k1, k2, k3, k4 = jax.random.split(key, 5)
            dirs.append(dict(
                w_ih=jax.random.uniform(k1, (4 * H, in_size), jnp.float32, -scale, scale),
                w_hh=jax.random.uniform(k2, (4 * H, H), jnp.float32, -scale, scale),
                b_ih=jax.random.uniform(k3, (4 * H,), jnp.float32, -scale, scale),
                b_hh=jax.random.uniform(k4, (4 * H,), jnp.float32, -scale, scale)))
        params["lstm"].append(dirs)
    key, kf1, kf2, kd1, kd2 = jax.random.split(key, 5)
    sf = 1.0 / jnp.sqrt(jnp.float32(2 * H))
    sd = 1.0 / jnp.sqrt(jnp.float32(32))
    params["f_w"] = jax.random.uniform(kf1, (32, 2 * H), jnp.float32, -sf, sf)
    params["f_b"] = jax.random.uniform(kf2, (32,), jnp.float32, -sf, sf)
    params["d_w"] = jax.random.uniform(kd1, (n_classes, 32), jnp.float32, -sd, sd)
    params["d_b"] = jax.random.uniform(kd2, (n_classes,), jnp.float32, -sd, sd)
    return params


# ----------------------------------------------------------------------------
# Pure-JAX reference (PyTorch semantics) for validation.
# ----------------------------------------------------------------------------
def _lstm_dir_ref(x_tm, w_ih, w_hh, b_ih, b_hh):
    L, B, _ = x_tm.shape
    H = w_hh.shape[1]

    def step(carry, x_t):
        h, c = carry
        gates = x_t @ w_ih.T + h @ w_hh.T + b_ih + b_hh
        i = jax.nn.sigmoid(gates[:, :H])
        f = jax.nn.sigmoid(gates[:, H:2 * H])
        g = jnp.tanh(gates[:, 2 * H:3 * H])
        o = jax.nn.sigmoid(gates[:, 3 * H:])
        c = f * c + i * g
        h = o * jnp.tanh(c)
        return (h, c), h

    zeros = jnp.zeros((B, H), jnp.float32)
    _, hseq = lax.scan(step, (zeros, zeros), x_tm)
    return hseq


def forward_ref(params, x, num_layers):
    x_tm = jnp.transpose(x, (2, 0, 1)).astype(jnp.float32)
    layer_in = x_tm
    h_n = []
    for l in range(num_layers):
        pf, pb = params["lstm"][l]
        hf = _lstm_dir_ref(layer_in, pf["w_ih"], pf["w_hh"], pf["b_ih"], pf["b_hh"])
        hbr = _lstm_dir_ref(layer_in[::-1], pb["w_ih"], pb["w_hh"], pb["b_ih"], pb["b_hh"])
        h_n += [hf[-1], hbr[-1]]
        layer_in = jnp.concatenate([hf, hbr[::-1]], axis=-1)
    h_n = jnp.stack(h_n, axis=0)
    nl = num_layers
    feat = jnp.concatenate([jnp.mean(h_n[:nl], axis=0), jnp.mean(h_n[nl:], axis=0)], axis=1)
    hid = jnp.maximum(feat @ params["f_w"].T + params["f_b"], 0.0)
    return hid @ params["d_w"].T + params["d_b"]


if __name__ == "__main__":
    # Small shapes consistent with the module's forward: (n_samples, n_channel, n_length).
    B, C, L = 2, 4, 8
    input_size = C
    hidden_size = 32
    num_layers = 2
    n_classes = 4

    key = jax.random.PRNGKey(0)
    kx, kp = jax.random.split(key)
    x = jax.random.normal(kx, (B, C, L), jnp.float32)
    params = init_params(kp, input_size, hidden_size, n_classes, num_layers)
    prep = prepare_params(params, num_layers)

    out = forward(prep, x, num_layers, hidden_size)
    out = jax.block_until_ready(out)

    ref = forward_ref(params, x, num_layers)
    assert out.shape == (B, n_classes)
    assert jnp.allclose(out, ref, rtol=1e-4, atol=1e-4), (out, ref)

    print("KERNEL_OK")
</pallas_src>

<mosaic_0001>
module attributes {stable_mosaic.version = 11 : i64} {
  func.func @kernel(%arg0: memref<16x8xf32, #tpu.memory_space<vmem>>, %arg1: memref<8x256xf32, #tpu.memory_space<vmem>>, %arg2: memref<64x256xf32, #tpu.memory_space<vmem>>, %arg3: memref<1x256xf32, #tpu.memory_space<vmem>>, %arg4: memref<128x256xf32, #tpu.memory_space<vmem>>, %arg5: memref<64x256xf32, #tpu.memory_space<vmem>>, %arg6: memref<1x256xf32, #tpu.memory_space<vmem>>, %arg7: memref<64x32xf32, #tpu.memory_space<vmem>>, %arg8: memref<1x32xf32, #tpu.memory_space<vmem>>, %arg9: memref<32x4xf32, #tpu.memory_space<vmem>>, %arg10: memref<1x4xf32, #tpu.memory_space<vmem>>, %arg11: memref<2x4xf32, #tpu.memory_space<vmem>>, %arg12: memref<16x128xf32, #tpu.memory_space<vmem>>, %arg13: memref<16x256xf32, #tpu.memory_space<vmem>>) attributes {dimension_semantics = [], scalar_prefetch = 0 : i64, scratch_operands = 2 : i64, tpu.core_type = #tpu.core_type<tc>} {
    %c0 = arith.constant 0 : index
    %c0_0 = arith.constant 0 : index
    %0 = vector.load %arg0[%c0, %c0_0] : memref<16x8xf32, #tpu.memory_space<vmem>>, vector<16x8xf32>
    %c0_1 = arith.constant 0 : index
    %c0_2 = arith.constant 0 : index
    %1 = vector.load %arg1[%c0_1, %c0_2] : memref<8x256xf32, #tpu.memory_space<vmem>>, vector<8x256xf32>
    %cst = arith.constant dense<0.000000e+00> : vector<16x256xf32>
    %2 = tpu.matmul %0, %1, %cst {dimension_numbers = #tpu.dot_dimension_numbers<[1], [0], [0], [1], [0, 0, 1, 1], [], []>} : vector<16x8xf32>, vector<8x256xf32>, vector<16x256xf32> -> vector<16x256xf32>
    %c0_3 = arith.constant 0 : index
    %c0_4 = arith.constant 0 : index
    %3 = vector.load %arg3[%c0_3, %c0_4] : memref<1x256xf32, #tpu.memory_space<vmem>>, vector<1x256xf32>
    %4 = vector.broadcast %3 : vector<1x256xf32> to vector<16x256xf32>
    %5 = arith.addf %2, %4 : vector<16x256xf32>
    %c0_5 = arith.constant 0 : index
    %c0_6 = arith.constant 0 : index
    %6 = vector.load %arg13[%c0_5, %c0_6] : memref<16x256xf32, #tpu.memory_space<vmem>>, vector<16x256xf32>
    tpu.vector_store %arg13[%c0_5, %c0_6], %5 {strides = array<i32>} : memref<16x256xf32, #tpu.memory_space<vmem>>, vector<16x256xf32>,
    %c0_7 = arith.constant 0 : index
    %c0_8 = arith.constant 0 : index
    %7 = vector.load %arg2[%c0_7, %c0_8] : memref<64x256xf32, #tpu.memory_space<vmem>>, vector<64x256xf32>
    %cst_9 = arith.constant 0.000000e+00 : f32
    %8 = vector.broadcast %cst_9 : f32 to vector<2x64xf32>
    %cst_10 = arith.constant 0.000000e+00 : f32
    %9 = vector.broadcast %cst_10 : f32 to vector<2x64xf32>
    %c0_11 = arith.constant 0 : index
    %c0_12 = arith.constant 0 : index
    %10 = vector.load %arg13[%c0_11, %c0_12] : memref<16x256xf32, #tpu.memory_space<vmem>>, vector<2x256xf32>
    %cst_13 = arith.constant dense<0.000000e+00> : vector<2x256xf32>
    %11 = tpu.matmul %8, %7, %cst_13 {dimension_numbers = #tpu.dot_dimension_numbers<[1], [0], [0], [1], [0, 0, 1, 1], [], []>} : vector<2x64xf32>, vector<64x256xf32>, vector<2x256xf32> -> vector<2x256xf32>
    %12 = arith.addf %10, %11 : vector<2x256xf32>
    %13 = vector.extract_strided_slice %12 {offsets = [0, 0], sizes = [2, 192], strides = [1, 1]} : vector<2x256xf32> to vector<2x192xf32>
    %14 = arith.negf %13 : vector<2x192xf32>
    %15 = math.exp %14 : vector<2x192xf32>
    %cst_14 = arith.constant 1.000000e+00 : f32
    %16 = vector.broadcast %cst_14 : f32 to vector<2x192xf32>
    %17 = arith.addf %16, %15 : vector<2x192xf32>
    %18 = arith.divf %16, %17 : vector<2x192xf32>
    %19 = vector.extract_strided_slice %12 {offsets = [0, 192], sizes = [2, 64], strides = [1, 1]} : vector<2x256xf32> to vector<2x64xf32>
    %20 = math.tanh %19 : vector<2x64xf32>
    %21 = vector.extract_strided_slice %18 {offsets = [0, 64], sizes = [2, 64], strides = [1, 1]} : vector<2x192xf32> to vector<2x64xf32>
    %22 = arith.mulf %21, %9 : vector<2x64xf32>
    %23 = vector.extract_strided_slice %18 {offsets = [0, 0], sizes = [2, 64], strides = [1, 1]} : vector<2x192xf32> to vector<2x64xf32>
    %24 = arith.mulf %23, %20 : vector<2x64xf32>
    %25 = arith.addf %22, %24 : vector<2x64xf32>
    %26 = vector.extract_strided_slice %18 {offsets = [0, 128], sizes = [2, 64], strides = [1, 1]} : vector<2x192xf32> to vector<2x64xf32>
    %27 = math.tanh %25 : vector<2x64xf32>
    %28 = arith.mulf %26, %27 : vector<2x64xf32>
    %c0_15 = arith.constant 0 : index
    %c0_16 = arith.constant 0 : index
    %29 = vector.load %arg12[%c0_15, %c0_16] : memref<16x128xf32, #tpu.memory_space<vmem>>, vector<2x64xf32>
    tpu.vector_store %arg12[%c0_15, %c0_16], %28 {strides = array<i32>} : memref<16x128xf32, #tpu.memory_space<vmem>>, vector<2x64xf32>,
    %c14 = arith.constant 14 : index
    %c64 = arith.constant 64 : index
    %30 = vector.load %arg12[%c14, %c64] : memref<16x128xf32, #tpu.memory_space<vmem>>, vector<2x64xf32>
    tpu.vector_store %arg12[%c14, %c64], %28 {strides = array<i32>} : memref<16x128xf32, #tpu.memory_space<vmem>>, vector<2x64xf32>,
    %c2 = arith.constant 2 : index
    %c0_17 = arith.constant 0 : index
    %31 = vector.load %arg13[%c2, %c0_17] : memref<16x256xf32, #tpu.memory_space<vmem>>, vector<2x256xf32>
    %cst_18 = arith.constant dense<0.000000e+00> : vector<2x256xf32>
    %32 = tpu.matmul %28, %7, %cst_18 {dimension_numbers = #tpu.dot_dimension_numbers<[1], [0], [0], [1], [0, 0, 1, 1], [], []>} : vector<2x64xf32>, vector<64x256xf32>, vector<2x256xf32> -> vector<2x256xf32>
    %33 = arith.addf %31, %32 : vector<2x256xf32>
    %34 = vector.extract_strided_slice %33 {offsets = [0, 0], sizes = [2, 192], strides = [1, 1]} : vector<2x256xf32> to vector<2x192xf32>
    %35 = arith.negf %34 : vector<2x192xf32>
    %36 = math.exp %35 : vector<2x192xf32>
    %cst_19 = arith.constant 1.000000e+00 : f32
    %37 = vector.broadcast %cst_19 : f32 to vector<2x192xf32>
    %38 = arith.addf %37, %36 : vector<2x192xf32>
    %39 = arith.divf %37, %38 : vector<2x192xf32>
    %40 = vector.extract_strided_slice %33 {offsets = [0, 192], sizes = [2, 64], strides = [1, 1]} : vector<2x256xf32> to vector<2x64xf32>
    %41 = math.tanh %40 : vector<2x64xf32>
    %42 = vector.extract_strided_slice %39 {offsets = [0, 64], sizes = [2, 64], strides = [1, 1]} : vector<2x192xf32> to vector<2x64xf32>
    %43 = arith.mulf %42, %25 : vector<2x64xf32>
    %44 = vector.extract_strided_slice %39 {offsets = [0, 0], sizes = [2, 64], strides = [1, 1]} : vector<2x192xf32> to vector<2x64xf32>
    %45 = arith.mulf %44, %41 : vector<2x64xf32>
    %46 = arith.addf %43, %45 : vector<2x64xf32>
    %47 = vector.extract_strided_slice %39 {offsets = [0, 128], sizes = [2, 64], strides = [1, 1]} : vector<2x192xf32> to vector<2x64xf32>
    %48 = math.tanh %46 : vector<2x64xf32>
    %49 = arith.mulf %47, %48 : vector<2x64xf32>
    %c2_20 = arith.constant 2 : index
    %c0_21 = arith.constant 0 : index
    %50 = vector.load %arg12[%c2_20, %c0_21] : memref<16x128xf32, #tpu.memory_space<vmem>>, vector<2x64xf32>
    tpu.vector_store %arg12[%c2_20, %c0_21], %49 {strides = array<i32>} : memref<16x128xf32, #tpu.memory_space<vmem>>, vector<2x64xf32>,
    %c12 = arith.constant 12 : index
    %c64_22 = arith.constant 64 : index
    %51 = vector.load %arg12[%c12, %c64_22] : memref<16x128xf32, #tpu.memory_space<vmem>>, vector<2x64xf32>
    tpu.vector_store %arg12[%c12, %c64_22], %49 {strides = array<i32>} : memref<16x128xf32, #tpu.memory_space<vmem>>, vector<2x64xf32>,
    %c4 = arith.constant 4 : index
    %c0_23 = arith.constant 0 : index
    %52 = vector.load %arg13[%c4, %c0_23] : memref<16x256xf32, #tpu.memory_space<vmem>>, vector<2x256xf32>
    %cst_24 = arith.constant dense<0.000000e+00> : vector<2x256xf32>
    %53 = tpu.matmul %49, %7, %cst_24 {dimension_numbers = #tpu.dot_dimension_numbers<[1], [0], [0], [1], [0, 0, 1, 1], [], []>} : vector<2x64xf32>, vector<64x256xf32>, vector<2x256xf32> -> vector<2x256xf32>
    %54 = arith.addf %52, %53 : vector<2x256xf32>
    %55 = vector.extract_strided_slice %54 {offsets = [0, 0], sizes = [2, 192], strides = [1, 1]} : vector<2x256xf32> to vector<2x192xf32>
    %56 = arith.negf %55 : vector<2x192xf32>
    %57 = math.exp %56 : vector<2x192xf32>
    %cst_25 = arith.constant 1.000000e+00 : f32
    %58 = vector.broadcast %cst_25 : f32 to vector<2x192xf32>
    %59 = arith.addf %58, %57 : vector<2x192xf32>
    %60 = arith.divf %58, %59 : vector<2x192xf32>
    %61 = vector.extract_strided_slice %54 {offsets = [0, 192], sizes = [2, 64], strides = [1, 1]} : vector<2x256xf32> to vector<2x64xf32>
    %62 = math.tanh %61 : vector<2x64xf32>
    %63 = vector.extract_strided_slice %60 {offsets = [0, 64], sizes = [2, 64], strides = [1, 1]} : vector<2x192xf32> to vector<2x64xf32>
    %64 = arith.mulf %63, %46 : vector<2x64xf32>
    %65 = vector.extract_strided_slice %60 {offsets = [0, 0], sizes = [2, 64], strides = [1, 1]} : vector<2x192xf32> to vector<2x64xf32>
    %66 = arith.mulf %65, %62 : vector<2x64xf32>
    %67 = arith.addf %64, %66 : vector<2x64xf32>
    %68 = vector.extract_strided_slice %60 {offsets = [0, 128], sizes = [2, 64], strides = [1, 1]} : vector<2x192xf32> to vector<2x64xf32>
    %69 = math.tanh %67 : vector<2x64xf32>
    %70 = arith.mulf %68, %69 : vector<2x64xf32>
    %c4_26 = arith.constant 4 : index
    %c0_27 = arith.constant 0 : index
    %71 = vector.load %arg12[%c4_26, %c0_27] : memref<16x128xf32, #tpu.memory_space<vmem>>, vector<2x64xf32>
    tpu.vector_store %arg12[%c4_26, %c0_27], %70 {strides = array<i32>} : memref<16x128xf32, #tpu.memory_space<vmem>>, vector<2x64xf32>,
    %c10 = arith.constant 10 : index
    %c64_28 = arith.constant 64 : index
    %72 = vector.load %arg12[%c10, %c64_28] : memref<16x128xf32, #tpu.memory_space<vmem>>, vector<2x64xf32>
    tpu.vector_store %arg12[%c10, %c64_28], %70 {strides = array<i32>} : memref<16x128xf32, #tpu.memory_space<vmem>>, vector<2x64xf32>,
    %c6 = arith.constant 6 : index
    %c0_29 = arith.constant 0 : index
    %73 = vector.load %arg13[%c6, %c0_29] : memref<16x256xf32, #tpu.memory_space<vmem>>, vector<2x256xf32>
    %cst_30 = arith.constant dense<0.000000e+00> : vector<2x256xf32>
    %74 = tpu.matmul %70, %7, %cst_30 {dimension_numbers = #tpu.dot_dimension_numbers<[1], [0], [0], [1], [0, 0, 1, 1], [], []>} : vector<2x64xf32>, vector<64x256xf32>, vector<2x256xf32> -> vector<2x256xf32>
    %75 = arith.addf %73, %74 : vector<2x256xf32>
    %76 = vector.extract_strided_slice %75 {offsets = [0, 0], sizes = [2, 192], strides = [1, 1]} : vector<2x256xf32> to vector<2x192xf32>
    %77 = arith.negf %76 : vector<2x192xf32>
    %78 = math.exp %77 : vector<2x192xf32>
    %cst_31 = arith.constant 1.000000e+00 : f32
    %79 = vector.broadcast %cst_31 : f32 to vector<2x192xf32>
    %80 = arith.addf %79, %78 : vector<2x192xf32>
    %81 = arith.divf %79, %80 : vector<2x192xf32>
    %82 = vector.extract_strided_slice %75 {offsets = [0, 192], sizes = [2, 64], strides = [1, 1]} : vector<2x256xf32> to vector<2x64xf32>
    %83 = math.tanh %82 : vector<2x64xf32>
    %84 = vector.extract_strided_slice %81 {offsets = [0, 64], sizes = [2, 64], strides = [1, 1]} : vector<2x192xf32> to vector<2x64xf32>
    %85 = arith.mulf %84, %67 : vector<2x64xf32>
    %86 = vector.extract_strided_slice %81 {offsets = [0, 0], sizes = [2, 64], strides = [1, 1]} : vector<2x192xf32> to vector<2x64xf32>
    %87 = arith.mulf %86, %83 : vector<2x64xf32>
    %88 = arith.addf %85, %87 : vector<2x64xf32>
    %89 = vector.extract_strided_slice %81 {offsets = [0, 128], sizes = [2, 64], strides = [1, 1]} : vector<2x192xf32> to vector<2x64xf32>
    %90 = math.tanh %88 : vector<2x64xf32>
    %91 = arith.mulf %89, %90 : vector<2x64xf32>
    %c6_32 = arith.constant 6 : index
    %c0_33 = arith.constant 0 : index
    %92 = vector.load %arg12[%c6_32, %c0_33] : memref<16x128xf32, #tpu.memory_space<vmem>>, vector<2x64xf32>
    tpu.vector_store %arg12[%c6_32, %c0_33], %91 {strides = array<i32>} : memref<16x128xf32, #tpu.memory_space<vmem>>, vector<2x64xf32>,
    %c8 = arith.constant 8 : index
    %c64_34 = arith.constant 64 : index
    %93 = vector.load %arg12[%c8, %c64_34] : memref<16x128xf32, #tpu.memory_space<vmem>>, vector<2x64xf32>
    tpu.vector_store %arg12[%c8, %c64_34], %91 {strides = array<i32>} : memref<16x128xf32, #tpu.memory_space<vmem>>, vector<2x64xf32>,
    %c8_35 = arith.constant 8 : index
    %c0_36 = arith.constant 0 : index
    %94 = vector.load %arg13[%c8_35, %c0_36] : memref<16x256xf32, #tpu.memory_space<vmem>>, vector<2x256xf32>
    %cst_37 = arith.constant dense<0.000000e+00> : vector<2x256xf32>
    %95 = tpu.matmul %91, %7, %cst_37 {dimension_numbers = #tpu.dot_dimension_numbers<[1], [0], [0], [1], [0, 0, 1, 1], [], []>} : vector<2x64xf32>, vector<64x256xf32>, vector<2x256xf32> -> vector<2x256xf32>
    %96 = arith.addf %94, %95 : vector<2x256xf32>
    %97 = vector.extract_strided_slice %96 {offsets = [0, 0], sizes = [2, 192], strides = [1, 1]} : vector<2x256xf32> to vector<2x192xf32>
    %98 = arith.negf %97 : vector<2x192xf32>
    %99 = math.exp %98 : vector<2x192xf32>
    %cst_38 = arith.constant 1.000000e+00 : f32
    %100 = vector.broadcast %cst_38 : f32 to vector<2x192xf32>
    %101 = arith.addf %100, %99 : vector<2x192xf32>
    %102 = arith.divf %100, %101 : vector<2x192xf32>
    %103 = vector.extract_strided_slice %96 {offsets = [0, 192], sizes = [2, 64], strides = [1, 1]} : vector<2x256xf32> to vector<2x64xf32>
    %104 = math.tanh %103 : vector<2x64xf32>
    %105 = vector.extract_strided_slice %102 {offsets = [0, 64], sizes = [2, 64], strides = [1, 1]} : vector<2x192xf32> to vector<2x64xf32>
    %106 = arith.mulf %105, %88 : vector<2x64xf32>
    %107 = vector.extract_strided_slice %102 {offsets = [0, 0], sizes = [2, 64], strides = [1, 1]} : vector<2x192xf32> to vector<2x64xf32>
    %108 = arith.mulf %107, %104 : vector<2x64xf32>
    %109 = arith.addf %106, %108 : vector<2x64xf32>
    %110 = vector.extract_strided_slice %102 {offsets = [0, 128], sizes = [2, 64], strides = [1, 1]} : vector<2x192xf32> to vector<2x64xf32>
    %111 = math.tanh %109 : vector<2x64xf32>
    %112 = arith.mulf %110, %111 : vector<2x64xf32>
    %c8_39 = arith.constant 8 : index
    %c0_40 = arith.constant 0 : index
    %113 = vector.load %arg12[%c8_39, %c0_40] : memref<16x128xf32, #tpu.memory_space<vmem>>, vector<2x64xf32>
    tpu.vector_store %arg12[%c8_39, %c0_40], %112 {strides = array<i32>} : memref<16x128xf32, #tpu.memory_space<vmem>>, vector<2x64xf32>,
    %c6_41 = arith.constant 6 : index
    %c64_42 = arith.constant 64 : index
    %114 = vector.load %arg12[%c6_41, %c64_42] : memref<16x128xf32, #tpu.memory_space<vmem>>, vector<2x64xf32>
    tpu.vector_store %arg12[%c6_41, %c64_42], %112 {strides = array<i32>} : memref<16x128xf32, #tpu.memory_space<vmem>>, vector<2x64xf32>,
    %c10_43 = arith.constant 10 : index
    %c0_44 = arith.constant 0 : index
    %115 = vector.load %arg13[%c10_43, %c0_44] : memref<16x256xf32, #tpu.memory_space<vmem>>, vector<2x256xf32>
    %cst_45 = arith.constant dense<0.000000e+00> : vector<2x256xf32>
    %116 = tpu.matmul %112, %7, %cst_45 {dimension_numbers = #tpu.dot_dimension_numbers<[1], [0], [0], [1], [0, 0, 1, 1], [], []>} : vector<2x64xf32>, vector<64x256xf32>, vector<2x256xf32> -> vector<2x256xf32>
    %117 = arith.addf %115, %116 : vector<2x256xf32>
    %118 = vector.extract_strided_slice %117 {offsets = [0, 0], sizes = [2, 192], strides = [1, 1]} : vector<2x256xf32> to vector<2x192xf32>
    %119 = arith.negf %118 : vector<2x192xf32>
    %120 = math.exp %119 : vector<2x192xf32>
    %cst_46 = arith.constant 1.000000e+00 : f32
    %121 = vector.broadcast %cst_46 : f32 to vector<2x192xf32>
    %122 = arith.addf %121, %120 : vector<2x192xf32>
    %123 = arith.divf %121, %122 : vector<2x192xf32>
    %124 = vector.extract_strided_slice %117 {offsets = [0, 192], sizes = [2, 64], strides = [1, 1]} : vector<2x256xf32> to vector<2x64xf32>
    %125 = math.tanh %124 : vector<2x64xf32>
    %126 = vector.extract_strided_slice %123 {offsets = [0, 64], sizes = [2, 64], strides = [1, 1]} : vector<2x192xf32> to vector<2x64xf32>
    %127 = arith.mulf %126, %109 : vector<2x64xf32>
    %128 = vector.extract_strided_slice %123 {offsets = [0, 0], sizes = [2, 64], strides = [1, 1]} : vector<2x192xf32> to vector<2x64xf32>
    %129 = arith.mulf %128, %125 : vector<2x64xf32>
    %130 = arith.addf %127, %129 : vector<2x64xf32>
    %131 = vector.extract_strided_slice %123 {offsets = [0, 128], sizes = [2, 64], strides = [1, 1]} : vector<2x192xf32> to vector<2x64xf32>
    %132 = math.tanh %130 : vector<2x64xf32>
    %133 = arith.mulf %131, %132 : vector<2x64xf32>
    %c10_47 = arith.constant 10 : index
    %c0_48 = arith.constant 0 : index
    %134 = vector.load %arg12[%c10_47, %c0_48] : memref<16x128xf32, #tpu.memory_space<vmem>>, vector<2x64xf32>
    tpu.vector_store %arg12[%c10_47, %c0_48], %133 {strides = array<i32>} : memref<16x128xf32, #tpu.memory_space<vmem>>, vector<2x64xf32>,
    %c4_49 = arith.constant 4 : index
    %c64_50 = arith.constant 64 : index
    %135 = vector.load %arg12[%c4_49, %c64_50] : memref<16x128xf32, #tpu.memory_space<vmem>>, vector<2x64xf32>
    tpu.vector_store %arg12[%c4_49, %c64_50], %133 {strides = array<i32>} : memref<16x128xf32, #tpu.memory_space<vmem>>, vector<2x64xf32>,
    %c12_51 = arith.constant 12 : index
    %c0_52 = arith.constant 0 : index
    %136 = vector.load %arg13[%c12_51, %c0_52] : memref<16x256xf32, #tpu.memory_space<vmem>>, vector<2x256xf32>
    %cst_53 = arith.constant dense<0.000000e+00> : vector<2x256xf32>
    %137 = tpu.matmul %133, %7, %cst_53 {dimension_numbers = #tpu.dot_dimension_numbers<[1], [0], [0], [1], [0, 0, 1, 1], [], []>} : vector<2x64xf32>, vector<64x256xf32>, vector<2x256xf32> -> vector<2x256xf32>
    %138 = arith.addf %136, %137 : vector<2x256xf32>
    %139 = vector.extract_strided_slice %138 {offsets = [0, 0], sizes = [2, 192], strides = [1, 1]} : vector<2x256xf32> to vector<2x192xf32>
    %140 = arith.negf %139 : vector<2x192xf32>
    %141 = math.exp %140 : vector<2x192xf32>
    %cst_54 = arith.constant 1.000000e+00 : f32
    %142 = vector.broadcast %cst_54 : f32 to vector<2x192xf32>
    %143 = arith.addf %142, %141 : vector<2x192xf32>
    %144 = arith.divf %142, %143 : vector<2x192xf32>
    %145 = vector.extract_strided_slice %138 {offsets = [0, 192], sizes = [2, 64], strides = [1, 1]} : vector<2x256xf32> to vector<2x64xf32>
    %146 = math.tanh %145 : vector<2x64xf32>
    %147 = vector.extract_strided_slice %144 {offsets = [0, 64], sizes = [2, 64], strides = [1, 1]} : vector<2x192xf32> to vector<2x64xf32>
    %148 = arith.mulf %147, %130 : vector<2x64xf32>
    %149 = vector.extract_strided_slice %144 {offsets = [0, 0], sizes = [2, 64], strides = [1, 1]} : vector<2x192xf32> to vector<2x64xf32>
    %150 = arith.mulf %149, %146 : vector<2x64xf32>
    %151 = arith.addf %148, %150 : vector<2x64xf32>
    %152 = vector.extract_strided_slice %144 {offsets = [0, 128], sizes = [2, 64], strides = [1, 1]} : vector<2x192xf32> to vector<2x64xf32>
    %153 = math.tanh %151 : vector<2x64xf32>
    %154 = arith.mulf %152, %153 : vector<2x64xf32>
    %c12_55 = arith.constant 12 : index
    %c0_56 = arith.constant 0 : index
    %155 = vector.load %arg12[%c12_55, %c0_56] : memref<16x128xf32, #tpu.memory_space<vmem>>, vector<2x64xf32>
    tpu.vector_store %arg12[%c12_55, %c0_56], %154 {strides = array<i32>} : memref<16x128xf32, #tpu.memory_space<vmem>>, vector<2x64xf32>,
    %c2_57 = arith.constant 2 : index
    %c64_58 = arith.constant 64 : index
    %156 = vector.load %arg12[%c2_57, %c64_58] : memref<16x128xf32, #tpu.memory_space<vmem>>, vector<2x64xf32>
    tpu.vector_store %arg12[%c2_57, %c64_58], %154 {strides = array<i32>} : memref<16x128xf32, #tpu.memory_space<vmem>>, vector<2x64xf32>,
    %c14_59 = arith.constant 14 : index
    %c0_60 = arith.constant 0 : index
    %157 = vector.load %arg13[%c14_59, %c0_60] : memref<16x256xf32, #tpu.memory_space<vmem>>, vector<2x256xf32>
    %cst_61 = arith.constant dense<0.000000e+00> : vector<2x256xf32>
    %158 = tpu.matmul %154, %7, %cst_61 {dimension_numbers = #tpu.dot_dimension_numbers<[1], [0], [0], [1], [0, 0, 1, 1], [], []>} : vector<2x64xf32>, vector<64x256xf32>, vector<2x256xf32> -> vector<2x256xf32>
    %159 = arith.addf %157, %158 : vector<2x256xf32>
    %160 = vector.extract_strided_slice %159 {offsets = [0, 0], sizes = [2, 192], strides = [1, 1]} : vector<2x256xf32> to vector<2x192xf32>
    %161 = arith.negf %160 : vector<2x192xf32>
    %162 = math.exp %161 : vector<2x192xf32>
    %cst_62 = arith.constant 1.000000e+00 : f32
    %163 = vector.broadcast %cst_62 : f32 to vector<2x192xf32>
    %164 = arith.addf %163, %162 : vector<2x192xf32>
    %165 = arith.divf %163, %164 : vector<2x192xf32>
    %166 = vector.extract_strided_slice %159 {offsets = [0, 192], sizes = [2, 64], strides = [1, 1]} : vector<2x256xf32> to vector<2x64xf32>
    %167 = math.tanh %166 : vector<2x64xf32>
    %168 = vector.extract_strided_slice %165 {offsets = [0, 64], sizes = [2, 64], strides = [1, 1]} : vector<2x192xf32> to vector<2x64xf32>
    %169 = arith.mulf %168, %151 : vector<2x64xf32>
    %170 = vector.extract_strided_slice %165 {offsets = [0, 0], sizes = [2, 64], strides = [1, 1]} : vector<2x192xf32> to vector<2x64xf32>
    %171 = arith.mulf %170, %167 : vector<2x64xf32>
    %172 = arith.addf %169, %171 : vector<2x64xf32>
    %173 = vector.extract_strided_slice %165 {offsets = [0, 128], sizes = [2, 64], strides = [1, 1]} : vector<2x192xf32> to vector<2x64xf32>
    %174 = math.tanh %172 : vector<2x64xf32>
    %175 = arith.mulf %173, %174 : vector<2x64xf32>
    %c14_63 = arith.constant 14 : index
    %c0_64 = arith.constant 0 : index
    %176 = vector.load %arg12[%c14_63, %c0_64] : memref<16x128xf32, #tpu.memory_space<vmem>>, vector<2x64xf32>
    tpu.vector_store %arg12[%c14_63, %c0_64], %175 {strides = array<i32>} : memref<16x128xf32, #tpu.memory_space<vmem>>, vector<2x64xf32>,
    %c0_65 = arith.constant 0 : index
    %c64_66 = arith.constant 64 : index
    %177 = vector.load %arg12[%c0_65, %c64_66] : memref<16x128xf32, #tpu.memory_space<vmem>>, vector<2x64xf32>
    tpu.vector_store %arg12[%c0_65, %c64_66], %175 {strides = array<i32>} : memref<16x128xf32, #tpu.memory_space<vmem>>, vector<2x64xf32>,
    %178 = vector.extract_strided_slice %175 {offsets = [0, 0], sizes = [2, 32], strides = [1, 1]} : vector<2x64xf32> to vector<2x32xf32>
    %179 = vector.extract_strided_slice %175 {offsets = [0, 32], sizes = [2, 32], strides = [1, 1]} : vector<2x64xf32> to vector<2x32xf32>
    %c0_67 = arith.constant 0 : index
    %c0_68 = arith.constant 0 : index
    %180 = vector.load %arg12[%c0_67, %c0_68] : memref<16x128xf32, #tpu.memory_space<vmem>>, vector<16x128xf32>
    %c0_69 = arith.constant 0 : index
    %c0_70 = arith.constant 0 : index
    %181 = vector.load %arg4[%c0_69, %c0_70] : memref<128x256xf32, #tpu.memory_space<vmem>>, vector<128x256xf32>
    %cst_71 = arith.constant dense<0.000000e+00> : vector<16x256xf32>
    %182 = tpu.matmul %180, %181, %cst_71 {dimension_numbers = #tpu.dot_dimension_numbers<[1], [0], [0], [1], [0, 0, 1, 1], [], []>} : vector<16x128xf32>, vector<128x256xf32>, vector<16x256xf32> -> vector<16x256xf32>
    %c0_72 = arith.constant 0 : index
    %c0_73 = arith.constant 0 : index
    %183 = vector.load %arg6[%c0_72, %c0_73] : memref<1x256xf32, #tpu.memory_space<vmem>>, vector<1x256xf32>
    %184 = vector.broadcast %183 : vector<1x256xf32> to vector<16x256xf32>
    %185 = arith.addf %182, %184 : vector<16x256xf32>
    %c0_74 = arith.constant 0 : index
    %c0_75 = arith.constant 0 : index
    %186 = vector.load %arg13[%c0_74, %c0_75] : memref<16x256xf32, #tpu.memory_space<vmem>>, vector<16x256xf32>
    tpu.vector_store %arg13[%c0_74, %c0_75], %185 {strides = array<i32>} : memref<16x256xf32, #tpu.memory_space<vmem>>, vector<16x256xf32>,
    %c0_76 = arith.constant 0 : index
    %c0_77 = arith.constant 0 : index
    %187 = vector.load %arg5[%c0_76, %c0_77] : memref<64x256xf32, #tpu.memory_space<vmem>>, vector<64x256xf32>
    %cst_78 = arith.constant 0.000000e+00 : f32
    %188 = vector.broadcast %cst_78 : f32 to vector<2x64xf32>
    %cst_79 = arith.constant 0.000000e+00 : f32
    %189 = vector.broadcast %cst_79 : f32 to vector<2x64xf32>
    %c0_80 = arith.constant 0 : index
    %c0_81 = arith.constant 0 : index
    %190 = vector.load %arg13[%c0_80, %c0_81] : memref<16x256xf32, #tpu.memory_space<vmem>>, vector<2x256xf32>
    %cst_82 = arith.constant dense<0.000000e+00> : vector<2x256xf32>
    %191 = tpu.matmul %188, %187, %cst_82 {dimension_numbers = #tpu.dot_dimension_numbers<[1], [0], [0], [1], [0, 0, 1, 1], [], []>} : vector<2x64xf32>, vector<64x256xf32>, vector<2x256xf32> -> vector<2x256xf32>
    %192 = arith.addf %190, %191 : vector<2x256xf32>
    %193 = vector.extract_strided_slice %192 {offsets = [0, 0], sizes = [2, 192], strides = [1, 1]} : vector<2x256xf32> to vector<2x192xf32>
    %194 = arith.negf %193 : vector<2x192xf32>
    %195 = math.exp %194 : vector<2x192xf32>
    %cst_83 = arith.constant 1.000000e+00 : f32
    %196 = vector.broadcast %cst_83 : f32 to vector<2x192xf32>
    %197 = arith.addf %196, %195 : vector<2x192xf32>
    %198 = arith.divf %196, %197 : vector<2x192xf32>
    %199 = vector.extract_strided_slice %192 {offsets = [0, 192], sizes = [2, 64], strides = [1, 1]} : vector<2x256xf32> to vector<2x64xf32>
    %200 = math.tanh %199 : vector<2x64xf32>
    %201 = vector.extract_strided_slice %198 {offsets = [0, 64], sizes = [2, 64], strides = [1, 1]} : vector<2x192xf32> to vector<2x64xf32>
    %202 = arith.mulf %201, %189 : vector<2x64xf32>
    %203 = vector.extract_strided_slice %198 {offsets = [0, 0], sizes = [2, 64], strides = [1, 1]} : vector<2x192xf32> to vector<2x64xf32>
    %204 = arith.mulf %203, %200 : vector<2x64xf32>
    %205 = arith.addf %202, %204 : vector<2x64xf32>
    %206 = vector.extract_strided_slice %198 {offsets = [0, 128], sizes = [2, 64], strides = [1, 1]} : vector<2x192xf32> to vector<2x64xf32>
    %207 = math.tanh %205 : vector<2x64xf32>
    %208 = arith.mulf %206, %207 : vector<2x64xf32>
    %c2_84 = arith.constant 2 : index
    %c0_85 = arith.constant 0 : index
    %209 = vector.load %arg13[%c2_84, %c0_85] : memref<16x256xf32, #tpu.memory_space<vmem>>, vector<2x256xf32>
    %cst_86 = arith.constant dense<0.000000e+00> : vector<2x256xf32>
    %210 = tpu.matmul %208, %187, %cst_86 {dimension_numbers = #tpu.dot_dimension_numbers<[1], [0], [0], [1], [0, 0, 1, 1], [], []>} : vector<2x64xf32>, vector<64x256xf32>, vector<2x256xf32> -> vector<2x256xf32>
    %211 = arith.addf %209, %210 : vector<2x256xf32>
    %212 = vector.extract_strided_slice %211 {offsets = [0, 0], sizes = [2, 192], strides = [1, 1]} : vector<2x256xf32> to vector<2x192xf32>
    %213 = arith.negf %212 : vector<2x192xf32>
    %214 = math.exp %213 : vector<2x192xf32>
    %cst_87 = arith.constant 1.000000e+00 : f32
    %215 = vector.broadcast %cst_87 : f32 to vector<2x192xf32>
    %216 = arith.addf %215, %214 : vector<2x192xf32>
    %217 = arith.divf %215, %216 : vector<2x192xf32>
    %218 = vector.extract_strided_slice %211 {offsets = [0, 192], sizes = [2, 64], strides = [1, 1]} : vector<2x256xf32> to vector<2x64xf32>
    %219 = math.tanh %218 : vector<2x64xf32>
    %220 = vector.extract_strided_slice %217 {offsets = [0, 64], sizes = [2, 64], strides = [1, 1]} : vector<2x192xf32> to vector<2x64xf32>
    %221 = arith.mulf %220, %205 : vector<2x64xf32>
    %222 = vector.extract_strided_slice %217 {offsets = [0, 0], sizes = [2, 64], strides = [1, 1]} : vector<2x192xf32> to vector<2x64xf32>
    %223 = arith.mulf %222, %219 : vector<2x64xf32>
    %224 = arith.addf %221, %223 : vector<2x64xf32>
    %225 = vector.extract_strided_slice %217 {offsets = [0, 128], sizes = [2, 64], strides = [1, 1]} : vector<2x192xf32> to vector<2x64xf32>
    %226 = math.tanh %224 : vector<2x64xf32>
    %227 = arith.mulf %225, %226 : vector<2x64xf32>
    %c4_88 = arith.constant 4 : index
    %c0_89 = arith.constant 0 : index
    %228 = vector.load %arg13[%c4_88, %c0_89] : memref<16x256xf32, #tpu.memory_space<vmem>>, vector<2x256xf32>
    %cst_90 = arith.constant dense<0.000000e+00> : vector<2x256xf32>
    %229 = tpu.matmul %227, %187, %cst_90 {dimension_numbers = #tpu.dot_dimension_numbers<[1], [0], [0], [1], [0, 0, 1, 1], [], []>} : vector<2x64xf32>, vector<64x256xf32>, vector<2x256xf32> -> vector<2x256xf32>
    %230 = arith.addf %228, %229 : vector<2x256xf32>
    %231 = vector.extract_strided_slice %230 {offsets = [0, 0], sizes = [2, 192], strides = [1, 1]} : vector<2x256xf32> to vector<2x192xf32>
    %232 = arith.negf %231 : vector<2x192xf32>
    %233 = math.exp %232 : vector<2x192xf32>
    %cst_91 = arith.constant 1.000000e+00 : f32
    %234 = vector.broadcast %cst_91 : f32 to vector<2x192xf32>
    %235 = arith.addf %234, %233 : vector<2x192xf32>
    %236 = arith.divf %234, %235 : vector<2x192xf32>
    %237 = vector.extract_strided_slice %230 {offsets = [0, 192], sizes = [2, 64], strides = [1, 1]} : vector<2x256xf32> to vector<2x64xf32>
    %238 = math.tanh %237 : vector<2x64xf32>
    %239 = vector.extract_strided_slice %236 {offsets = [0, 64], sizes = [2, 64], strides = [1, 1]} : vector<2x192xf32> to vector<2x64xf32>
    %240 = arith.mulf %239, %224 : vector<2x64xf32>
    %241 = vector.extract_strided_slice %236 {offsets = [0, 0], sizes = [2, 64], strides = [1, 1]} : vector<2x192xf32> to vector<2x64xf32>
    %242 = arith.mulf %241, %238 : vector<2x64xf32>
    %243 = arith.addf %240, %242 : vector<2x64xf32>
    %244 = vector.extract_strided_slice %236 {offsets = [0, 128], sizes = [2, 64], strides = [1, 1]} : vector<2x192xf32> to vector<2x64xf32>
    %245 = math.tanh %243 : vector<2x64xf32>
    %246 = arith.mulf %244, %245 : vector<2x64xf32>
    %c6_92 = arith.constant 6 : index
    %c0_93 = arith.constant 0 : index
    %247 = vector.load %arg13[%c6_92, %c0_93] : memref<16x256xf32, #tpu.memory_space<vmem>>, vector<2x256xf32>
    %cst_94 = arith.constant dense<0.000000e+00> : vector<2x256xf32>
    %248 = tpu.matmul %246, %187, %cst_94 {dimension_numbers = #tpu.dot_dimension_numbers<[1], [0], [0], [1], [0, 0, 1, 1], [], []>} : vector<2x64xf32>, vector<64x256xf32>, vector<2x256xf32> -> vector<2x256xf32>
    %249 = arith.addf %247, %248 : vector<2x256xf32>
    %250 = vector.extract_strided_slice %249 {offsets = [0, 0], sizes = [2, 192], strides = [1, 1]} : vector<2x256xf32> to vector<2x192xf32>
    %251 = arith.negf %250 : vector<2x192xf32>
    %252 = math.exp %251 : vector<2x192xf32>
    %cst_95 = arith.constant 1.000000e+00 : f32
    %253 = vector.broadcast %cst_95 : f32 to vector<2x192xf32>
    %254 = arith.addf %253, %252 : vector<2x192xf32>
    %255 = arith.divf %253, %254 : vector<2x192xf32>
    %256 = vector.extract_strided_slice %249 {offsets = [0, 192], sizes = [2, 64], strides = [1, 1]} : vector<2x256xf32> to vector<2x64xf32>
    %257 = math.tanh %256 : vector<2x64xf32>
    %258 = vector.extract_strided_slice %255 {offsets = [0, 64], sizes = [2, 64], strides = [1, 1]} : vector<2x192xf32> to vector<2x64xf32>
    %259 = arith.mulf %258, %243 : vector<2x64xf32>
    %260 = vector.extract_strided_slice %255 {offsets = [0, 0], sizes = [2, 64], strides = [1, 1]} : vector<2x192xf32> to vector<2x64xf32>
    %261 = arith.mulf %260, %257 : vector<2x64xf32>
    %262 = arith.addf %259, %261 : vector<2x64xf32>
    %263 = vector.extract_strided_slice %255 {offsets = [0, 128], sizes = [2, 64], strides = [1, 1]} : vector<2x192xf32> to vector<2x64xf32>
    %264 = math.tanh %262 : vector<2x64xf32>
    %265 = arith.mulf %263, %264 : vector<2x64xf32>
    %c8_96 = arith.constant 8 : index
    %c0_97 = arith.constant 0 : index
    %266 = vector.load %arg13[%c8_96, %c0_97] : memref<16x256xf32, #tpu.memory_space<vmem>>, vector<2x256xf32>
    %cst_98 = arith.constant dense<0.000000e+00> : vector<2x256xf32>
    %267 = tpu.matmul %265, %187, %cst_98 {dimension_numbers = #tpu.dot_dimension_numbers<[1], [0], [0], [1], [0, 0, 1, 1], [], []>} : vector<2x64xf32>, vector<64x256xf32>, vector<2x256xf32> -> vector<2x256xf32>
    %268 = arith.addf %266, %267 : vector<2x256xf32>
    %269 = vector.extract_strided_slice %268 {offsets = [0, 0], sizes = [2, 192], strides = [1, 1]} : vector<2x256xf32> to vector<2x192xf32>
    %270 = arith.negf %269 : vector<2x192xf32>
    %271 = math.exp %270 : vector<2x192xf32>
    %cst_99 = arith.constant 1.000000e+00 : f32
    %272 = vector.broadcast %cst_99 : f32 to vector<2x192xf32>
    %273 = arith.addf %272, %271 : vector<2x192xf32>
    %274 = arith.divf %272, %273 : vector<2x192xf32>
    %275 = vector.extract_strided_slice %268 {offsets = [0, 192], sizes = [2, 64], strides = [1, 1]} : vector<2x256xf32> to vector<2x64xf32>
    %276 = math.tanh %275 : vector<2x64xf32>
    %277 = vector.extract_strided_slice %274 {offsets = [0, 64], sizes = [2, 64], strides = [1, 1]} : vector<2x192xf32> to vector<2x64xf32>
    %278 = arith.mulf %277, %262 : vector<2x64xf32>
    %279 = vector.extract_strided_slice %274 {offsets = [0, 0], sizes = [2, 64], strides = [1, 1]} : vector<2x192xf32> to vector<2x64xf32>
    %280 = arith.mulf %279, %276 : vector<2x64xf32>
    %281 = arith.addf %278, %280 : vector<2x64xf32>
    %282 = vector.extract_strided_slice %274 {offsets = [0, 128], sizes = [2, 64], strides = [1, 1]} : vector<2x192xf32> to vector<2x64xf32>
    %283 = math.tanh %281 : vector<2x64xf32>
    %284 = arith.mulf %282, %283 : vector<2x64xf32>
    %c10_100 = arith.constant 10 : index
    %c0_101 = arith.constant 0 : index
    %285 = vector.load %arg13[%c10_100, %c0_101] : memref<16x256xf32, #tpu.memory_space<vmem>>, vector<2x256xf32>
    %cst_102 = arith.constant dense<0.000000e+00> : vector<2x256xf32>
    %286 = tpu.matmul %284, %187, %cst_102 {dimension_numbers = #tpu.dot_dimension_numbers<[1], [0], [0], [1], [0, 0, 1, 1], [], []>} : vector<2x64xf32>, vector<64x256xf32>, vector<2x256xf32> -> vector<2x256xf32>
    %287 = arith.addf %285, %286 : vector<2x256xf32>
    %288 = vector.extract_strided_slice %287 {offsets = [0, 0], sizes = [2, 192], strides = [1, 1]} : vector<2x256xf32> to vector<2x192xf32>
    %289 = arith.negf %288 : vector<2x192xf32>
    %290 = math.exp %289 : vector<2x192xf32>
    %cst_103 = arith.constant 1.000000e+00 : f32
    %291 = vector.broadcast %cst_103 : f32 to vector<2x192xf32>
    %292 = arith.addf %291, %290 : vector<2x192xf32>
    %293 = arith.divf %291, %292 : vector<2x192xf32>
    %294 = vector.extract_strided_slice %287 {offsets = [0, 192], sizes = [2, 64], strides = [1, 1]} : vector<2x256xf32> to vector<2x64xf32>
    %295 = math.tanh %294 : vector<2x64xf32>
    %296 = vector.extract_strided_slice %293 {offsets = [0, 64], sizes = [2, 64], strides = [1, 1]} : vector<2x192xf32> to vector<2x64xf32>
    %297 = arith.mulf %296, %281 : vector<2x64xf32>
    %298 = vector.extract_strided_slice %293 {offsets = [0, 0], sizes = [2, 64], strides = [1, 1]} : vector<2x192xf32> to vector<2x64xf32>
    %299 = arith.mulf %298, %295 : vector<2x64xf32>
    %300 = arith.addf %297, %299 : vector<2x64xf32>
    %301 = vector.extract_strided_slice %293 {offsets = [0, 128], sizes = [2, 64], strides = [1, 1]} : vector<2x192xf32> to vector<2x64xf32>
    %302 = math.tanh %300 : vector<2x64xf32>
    %303 = arith.mulf %301, %302 : vector<2x64xf32>
    %c12_104 = arith.constant 12 : index
    %c0_105 = arith.constant 0 : index
    %304 = vector.load %arg13[%c12_104, %c0_105] : memref<16x256xf32, #tpu.memory_space<vmem>>, vector<2x256xf32>
    %cst_106 = arith.constant dense<0.000000e+00> : vector<2x256xf32>
    %305 = tpu.matmul %303, %187, %cst_106 {dimension_numbers = #tpu.dot_dimension_numbers<[1], [0], [0], [1], [0, 0, 1, 1], [], []>} : vector<2x64xf32>, vector<64x256xf32>, vector<2x256xf32> -> vector<2x256xf32>
    %306 = arith.addf %304, %305 : vector<2x256xf32>
    %307 = vector.extract_strided_slice %306 {offsets = [0, 0], sizes = [2, 192], strides = [1, 1]} : vector<2x256xf32> to vector<2x192xf32>
    %308 = arith.negf %307 : vector<2x192xf32>
    %309 = math.exp %308 : vector<2x192xf32>
    %cst_107 = arith.constant 1.000000e+00 : f32
    %310 = vector.broadcast %cst_107 : f32 to vector<2x192xf32>
    %311 = arith.addf %310, %309 : vector<2x192xf32>
    %312 = arith.divf %310, %311 : vector<2x192xf32>
    %313 = vector.extract_strided_slice %306 {offsets = [0, 192], sizes = [2, 64], strides = [1, 1]} : vector<2x256xf32> to vector<2x64xf32>
    %314 = math.tanh %313 : vector<2x64xf32>
    %315 = vector.extract_strided_slice %312 {offsets = [0, 64], sizes = [2, 64], strides = [1, 1]} : vector<2x192xf32> to vector<2x64xf32>
    %316 = arith.mulf %315, %300 : vector<2x64xf32>
    %317 = vector.extract_strided_slice %312 {offsets = [0, 0], sizes = [2, 64], strides = [1, 1]} : vector<2x192xf32> to vector<2x64xf32>
    %318 = arith.mulf %317, %314 : vector<2x64xf32>
    %319 = arith.addf %316, %318 : vector<2x64xf32>
    %320 = vector.extract_strided_slice %312 {offsets = [0, 128], sizes = [2, 64], strides = [1, 1]} : vector<2x192xf32> to vector<2x64xf32>
    %321 = math.tanh %319 : vector<2x64xf32>
    %322 = arith.mulf %320, %321 : vector<2x64xf32>
    %c14_108 = arith.constant 14 : index
    %c0_109 = arith.constant 0 : index
    %323 = vector.load %arg13[%c14_108, %c0_109] : memref<16x256xf32, #tpu.memory_space<vmem>>, vector<2x256xf32>
    %cst_110 = arith.constant dense<0.000000e+00> : vector<2x256xf32>
    %324 = tpu.matmul %322, %187, %cst_110 {dimension_numbers = #tpu.dot_dimension_numbers<[1], [0], [0], [1], [0, 0, 1, 1], [], []>} : vector<2x64xf32>, vector<64x256xf32>, vector<2x256xf32> -> vector<2x256xf32>
    %325 = arith.addf %323, %324 : vector<2x256xf32>
    %326 = vector.extract_strided_slice %325 {offsets = [0, 0], sizes = [2, 192], strides = [1, 1]} : vector<2x256xf32> to vector<2x192xf32>
    %327 = arith.negf %326 : vector<2x192xf32>
    %328 = math.exp %327 : vector<2x192xf32>
    %cst_111 = arith.constant 1.000000e+00 : f32
    %329 = vector.broadcast %cst_111 : f32 to vector<2x192xf32>
    %330 = arith.addf %329, %328 : vector<2x192xf32>
    %331 = arith.divf %329, %330 : vector<2x192xf32>
    %332 = vector.extract_strided_slice %325 {offsets = [0, 192], sizes = [2, 64], strides = [1, 1]} : vector<2x256xf32> to vector<2x64xf32>
    %333 = math.tanh %332 : vector<2x64xf32>
    %334 = vector.extract_strided_slice %331 {offsets = [0, 64], sizes = [2, 64], strides = [1, 1]} : vector<2x192xf32> to vector<2x64xf32>
    %335 = arith.mulf %334, %319 : vector<2x64xf32>
    %336 = vector.extract_strided_slice %331 {offsets = [0, 0], sizes = [2, 64], strides = [1, 1]} : vector<2x192xf32> to vector<2x64xf32>
    %337 = arith.mulf %336, %333 : vector<2x64xf32>
    %338 = arith.addf %335, %337 : vector<2x64xf32>
    %339 = vector.extract_strided_slice %331 {offsets = [0, 128], sizes = [2, 64], strides = [1, 1]} : vector<2x192xf32> to vector<2x64xf32>
    %340 = math.tanh %338 : vector<2x64xf32>
    %341 = arith.mulf %339, %340 : vector<2x64xf32>
    %342 = vector.extract_strided_slice %341 {offsets = [0, 0], sizes = [2, 32], strides = [1, 1]} : vector<2x64xf32> to vector<2x32xf32>
    %343 = vector.extract_strided_slice %341 {offsets = [0, 32], sizes = [2, 32], strides = [1, 1]} : vector<2x64xf32> to vector<2x32xf32>
    %cst_112 = arith.constant 0.000000e+00 : f32
    %344 = vector.broadcast %cst_112 : f32 to vector<2x32xf32>
    %345 = arith.addf %344, %178 : vector<2x32xf32>
    %346 = arith.addf %345, %179 : vector<2x32xf32>
    %cst_113 = arith.constant 5.000000e-01 : f32
    %347 = vector.broadcast %cst_113 : f32 to vector<2x32xf32>
    %348 = arith.mulf %346, %347 : vector<2x32xf32>
    %cst_114 = arith.constant 0.000000e+00 : f32
    %349 = vector.broadcast %cst_114 : f32 to vector<2x32xf32>
    %350 = arith.addf %349, %342 : vector<2x32xf32>
    %351 = arith.addf %350, %343 : vector<2x32xf32>
    %cst_115 = arith.constant 5.000000e-01 : f32
    %352 = vector.broadcast %cst_115 : f32 to vector<2x32xf32>
    %353 = arith.mulf %351, %352 : vector<2x32xf32>
    %c0_116 = arith.constant 0 : index
    %c0_117 = arith.constant 0 : index
    %354 = vector.load %arg7[%c0_116, %c0_117] : memref<64x32xf32, #tpu.memory_space<vmem>>, vector<32x32xf32>
    %cst_118 = arith.constant dense<0.000000e+00> : vector<2x32xf32>
    %355 = tpu.matmul %348, %354, %cst_118 {dimension_numbers = #tpu.dot_dimension_numbers<[1], [0], [0], [1], [0, 0, 1, 1], [], []>} : vector<2x32xf32>, vector<32x32xf32>, vector<2x32xf32> -> vector<2x32xf32>
    %c32 = arith.constant 32 : index
    %c0_119 = arith.constant 0 : index
    %356 = vector.load %arg7[%c32, %c0_119] : memref<64x32xf32, #tpu.memory_space<vmem>>, vector<32x32xf32>
    %cst_120 = arith.constant dense<0.000000e+00> : vector<2x32xf32>
    %357 = tpu.matmul %353, %356, %cst_120 {dimension_numbers = #tpu.dot_dimension_numbers<[1], [0], [0], [1], [0, 0, 1, 1], [], []>} : vector<2x32xf32>, vector<32x32xf32>, vector<2x32xf32> -> vector<2x32xf32>
    %358 = arith.addf %355, %357 : vector<2x32xf32>
    %c0_121 = arith.constant 0 : index
    %c0_122 = arith.constant 0 : index
    %359 = vector.load %arg8[%c0_121, %c0_122] : memref<1x32xf32, #tpu.memory_space<vmem>>, vector<1x32xf32>
    %360 = vector.broadcast %359 : vector<1x32xf32> to vector<2x32xf32>
    %361 = arith.addf %358, %360 : vector<2x32xf32>
    %cst_123 = arith.constant 0.000000e+00 : f32
    %362 = vector.broadcast %cst_123 : f32 to vector<2x32xf32>
    %363 = arith.maximumf %361, %362 : vector<2x32xf32>
    %c0_124 = arith.constant 0 : index
    %c0_125 = arith.constant 0 : index
    %364 = vector.load %arg9[%c0_124, %c0_125] : memref<32x4xf32, #tpu.memory_space<vmem>>, vector<32x4xf32>
    %cst_126 = arith.constant dense<0.000000e+00> : vector<2x4xf32>
    %365 = tpu.matmul %363, %364, %cst_126 {dimension_numbers = #tpu.dot_dimension_numbers<[1], [0], [0], [1], [0, 0, 1, 1], [], []>} : vector<2x32xf32>, vector<32x4xf32>, vector<2x4xf32> -> vector<2x4xf32>
    %c0_127 = arith.constant 0 : index
    %c0_128 = arith.constant 0 : index
    %366 = vector.load %arg10[%c0_127, %c0_128] : memref<1x4xf32, #tpu.memory_space<vmem>>, vector<1x4xf32>
    %367 = vector.broadcast %366 : vector<1x4xf32> to vector<2x4xf32>
    %368 = arith.addf %365, %367 : vector<2x4xf32>
    %c0_129 = arith.constant 0 : index
    %c0_130 = arith.constant 0 : index
    %369 = vector.load %arg11[%c0_129, %c0_130] : memref<2x4xf32, #tpu.memory_space<vmem>>, vector<2x4xf32>
    tpu.vector_store %arg11[%c0_129, %c0_130], %368 {strides = array<i32>} : memref<2x4xf32, #tpu.memory_space<vmem>>, vector<2x4xf32>,
    return
  }
}

</mosaic_0001>

<llo_original>
// kernel: tpu_custom_call.1
$region0: #{tpu_custom_call.1}
  #allocation0 [shape = 'u32[]', space=smem, size = 0x4, offset = 0x4, fixed_abs, tag = 'smem constant byte address 0x4 - core index']
  #allocation1 [shape = 'u32[72,128]{1,0:T(1,128)}', space=vmem, size = 0x9000, scoped, tag = 'internal scratch']
  #allocation2 [shape = 'f32[16,128]{1,0:T(8,128)}', space=vmem, size = 0x2000, scoped, tag = 'scratch operand']
  #allocation3 [shape = 'f32[16,256]{1,0:T(8,128)}', space=vmem, size = 0x4000, scoped, tag = 'scratch operand']
  %s0 = inlined_call_operand.vmem [shape: f32[16,8], index: 0, kind: input, shape index: {}]
  %s1 = inlined_call_operand.vmem [shape: f32[8,256], index: 1, kind: input, shape index: {}]
  %s2 = inlined_call_operand.hbm [shape: f32[64,256], index: 2, kind: input, shape index: {}]
  %s3 = inlined_call_operand.vmem [shape: f32[1,256], index: 3, kind: input, shape index: {}]
  %s4 = inlined_call_operand.hbm [shape: f32[128,256], index: 4, kind: input, shape index: {}]
  %s5 = inlined_call_operand.hbm [shape: f32[64,256], index: 5, kind: input, shape index: {}]
  %s6 = inlined_call_operand.vmem [shape: f32[1,256], index: 6, kind: input, shape index: {}]
  %s7 = inlined_call_operand.vmem [shape: f32[64,32], index: 7, kind: input, shape index: {}]
  %s8 = inlined_call_operand.vmem [shape: f32[1,32], index: 8, kind: input, shape index: {}]
  %s9 = inlined_call_operand.vmem [shape: f32[32,4], index: 9, kind: input, shape index: {}]
  %s10 = inlined_call_operand.vmem [shape: f32[1,4], index: 10, kind: input, shape index: {}]
  %s11 = inlined_call_operand.hbm [shape: f32[2,4], index: 11, kind: output, shape index: {}]
  %s12 = sld [smem:[#allocation0]]
  $region66: #{tpu_custom_call.1} parent=0
    _
  %s14 = ssub.s32 1, %s12
  %s15 = scalar_select 0, %s14, %s12
  $region1: #{tpu_custom_call.1} parent=0
    #allocation4 [shape = 'u8[65536]{0}', space=vmem, size = 0x10000, scoped, tag = 'input window, operand 2, single buffered']
    #allocation5 [shape = 's32[1]{0}', space=sflag, size = 0x4, scoped, tag = 'scoped memory for tpu_custom_call.1']
    #allocation6 [shape = 's32[1]{0}', space=sflag, size = 0x4, scoped, tag = 'scoped memory for tpu_custom_call.1']
    #allocation7 [shape = 'u8[131072]{0}', space=vmem, size = 0x20000, scoped, tag = 'input window, operand 4, single buffered']
    #allocation8 [shape = 's32[1]{0}', space=sflag, size = 0x4, scoped, tag = 'scoped memory for tpu_custom_call.1']
    #allocation9 [shape = 'u8[65536]{0}', space=vmem, size = 0x10000, scoped, tag = 'input window, operand 5, single buffered']
    #allocation10 [shape = 'u8[1024]{0}', space=vmem, size = 0x400, scoped, tag = 'output window, operand 0, single buffered']
    %16 = vsyncpa [#allocation5], 0
    %17 = vsyncpa [#allocation8], 0
    %18 = vsyncpa [#allocation6], 0
    // Predicated region
    $region2: #{tpu_custom_call.1} parent=1 // pred_check
      _
    $region3: #{tpu_custom_call.1} parent=1 // pred_check_branch
      %20 = sbr.rel (0) target = $region5
    $region4: #{tpu_custom_call.1} parent=1 // pred_region
      _
    $region5: #{tpu_custom_call.1} parent=1 // pred_fallthru
      _
    // Predicated region
    $region6: #{tpu_custom_call.1} parent=1 // pred_check
      _
    $region7: #{tpu_custom_call.1} parent=1 // pred_check_branch
      %22 = sbr.rel (0) target = $region9
    $region8: #{tpu_custom_call.1} parent=1 // pred_region
      _
    $region9: #{tpu_custom_call.1} parent=1 // pred_fallthru
      _
    // Predicated region
    $region10: #{tpu_custom_call.1} parent=1 // pred_check
      _
    $region11: #{tpu_custom_call.1} parent=1 // pred_check_branch
      %24 = sbr.rel (0) target = $region13
    $region12: #{tpu_custom_call.1} parent=1 // pred_region
      %26 = vsyncadd [#allocation5], 0
      %s27 = sshll.u32 %s2, 4
      %s28 = int_to_ptr.hbm [resolvable:$true] %s27
      %s29 = sshll.u32 [#allocation4], 4
      %s30 = int_to_ptr.vmem [resolvable:$true] %s29
      %35 = dma.hbm_to_vmem [thread:$0]  %s28, 2048, %s30, [#allocation5], 256, 256, 16
    $region13: #{tpu_custom_call.1} parent=1 // pred_fallthru
      _
    // Predicated region
    $region14: #{tpu_custom_call.1} parent=1 // pred_check
      _
    $region15: #{tpu_custom_call.1} parent=1 // pred_check_branch
      %37 = sbr.rel (0) target = $region17
    $region16: #{tpu_custom_call.1} parent=1 // pred_region
      _
    $region17: #{tpu_custom_call.1} parent=1 // pred_fallthru
      _
    // Predicated region
    $region18: #{tpu_custom_call.1} parent=1 // pred_check
      _
    $region19: #{tpu_custom_call.1} parent=1 // pred_check_branch
      %39 = sbr.rel (0) target = $region21
    $region20: #{tpu_custom_call.1} parent=1 // pred_region
      %41 = vsyncadd [#allocation8], 0
      %s42 = sshll.u32 %s4, 4
      %s43 = int_to_ptr.hbm [resolvable:$true] %s42
      %s44 = sshll.u32 [#allocation7], 4
      %s45 = int_to_ptr.vmem [resolvable:$true] %s44
      %50 = dma.hbm_to_vmem [thread:$0]  %s43, 4096, %s45, [#allocation8], 256, 256, 16
    $region21: #{tpu_custom_call.1} parent=1 // pred_fallthru
      _
    // Predicated region
    $region22: #{tpu_custom_call.1} parent=1 // pred_check
      _
    $region23: #{tpu_custom_call.1} parent=1 // pred_check_branch
      %52 = sbr.rel (0) target = $region25
    $region24: #{tpu_custom_call.1} parent=1 // pred_region
      %54 = vsyncadd [#allocation8], 0
      %s55 = sshll.u32 %s5, 4
      %s56 = int_to_ptr.hbm [resolvable:$true] %s55
      %s57 = sshll.u32 [#allocation9], 4
      %s58 = int_to_ptr.vmem [resolvable:$true] %s57
      %63 = dma.hbm_to_vmem [thread:$0]  %s56, 2048, %s58, [#allocation8], 256, 256, 16
    $region25: #{tpu_custom_call.1} parent=1 // pred_fallthru
      _
    // Predicated region
    $region26: #{tpu_custom_call.1} parent=1 // pred_check
      _
    $region27: #{tpu_custom_call.1} parent=1 // pred_check_branch
      %65 = sbr.rel (0) target = $region29
    $region28: #{tpu_custom_call.1} parent=1 // pred_region
      _
    $region29: #{tpu_custom_call.1} parent=1 // pred_fallthru
      _
    // Predicated region
    $region30: #{tpu_custom_call.1} parent=1 // pred_check
      _
    $region31: #{tpu_custom_call.1} parent=1 // pred_check_branch
      %67 = sbr.rel (0) target = $region33
    $region32: #{tpu_custom_call.1} parent=1 // pred_region
      _
    $region33: #{tpu_custom_call.1} parent=1 // pred_fallthru
      _
    // Predicated region
    $region34: #{tpu_custom_call.1} parent=1 // pred_check
      _
    $region35: #{tpu_custom_call.1} parent=1 // pred_check_branch
      %69 = sbr.rel (0) target = $region37
    $region36: #{tpu_custom_call.1} parent=1 // pred_region
      _
    $region37: #{tpu_custom_call.1} parent=1 // pred_fallthru
      _
    // Predicated region
    $region38: #{tpu_custom_call.1} parent=1 // pred_check
      _
    $region39: #{tpu_custom_call.1} parent=1 // pred_check_branch
      %71 = sbr.rel (0) target = $region41
    $region40: #{tpu_custom_call.1} parent=1 // pred_region
      _
    $region41: #{tpu_custom_call.1} parent=1 // pred_fallthru
      _
    // Predicated region
    $region42: #{tpu_custom_call.1} parent=1 // pred_check
      _
    $region43: #{tpu_custom_call.1} parent=1 // pred_check_branch
      %73 = sbr.rel (0) target = $region45
    $region44: #{tpu_custom_call.1} parent=1 // pred_region
      _
    $region45: #{tpu_custom_call.1} parent=1 // pred_fallthru
      _
    // Predicated region
    $region46: #{tpu_custom_call.1} parent=1 // pred_check
      _
    $region47: #{tpu_custom_call.1} parent=1 // pred_check_branch
      %75 = sbr.rel (0) target = $region49
    $region48: #{tpu_custom_call.1} parent=1 // pred_region
      %77 = dma.done [#allocation5], 2048
    $region49: #{tpu_custom_call.1} parent=1 // pred_fallthru
      _
    // Predicated region
    $region50: #{tpu_custom_call.1} parent=1 // pred_check
      _
    $region51: #{tpu_custom_call.1} parent=1 // pred_check_branch
      %79 = sbr.rel (0) target = $region53
    $region52: #{tpu_custom_call.1} parent=1 // pred_region
      %81 = dma.done [#allocation8], 4096
    $region53: #{tpu_custom_call.1} parent=1 // pred_fallthru
      _
    // Predicated region
    $region54: #{tpu_custom_call.1} parent=1 // pred_check
      _
    $region55: #{tpu_custom_call.1} parent=1 // pred_check_branch
      %83 = sbr.rel (0) target = $region57
    $region56: #{tpu_custom_call.1} parent=1 // pred_region
      %85 = dma.done [#allocation8], 2048
    $region57: #{tpu_custom_call.1} parent=1 // pred_fallthru
      _
    %v86 = vld [vmem:[%s0] sm:$0xff]
    %v87 = vld [vmem:[%s0 + $0x8] sm:$0xff]
    %v88 = vld [vmem:[%s1] sm:$0xff]
    %v89 = vld [vmem:[%s1 + $0x8] sm:$0xff]
    %v90 = vld [vmem:[%s3] sm:$0x3]
    %v92 = vperm.slane %v90, 0
    %v93 = vperm.slane %v90, 1
    %vm96 = vcmask 64512
    %v98 = vsel %vm96, %v86, 0
    %v101 = vsel %vm96, %v87, 0
    %103 = vmatpush.msra.mxu0 0.0
    %104 = vmatpush.msra.mxu0 0.0
    %105 = vmatpush.msra.mxu0 0.0
    %106 = vmatpush.msra.mxu0 0.0
    %107 = vmatpush.msra.mxu0 0.0
    %108 = vmatpush.msra.mxu0 0.0
    %109 = vmatpush.msra.mxu0 0.0
    %110 = vmatpush.msra.mxu0 0.0
    %111 = vmatpush.msra.mxu0 0.0
    %112 = vmatpush.msra.mxu0 0.0
    %113 = vmatpush.msra.mxu0 0.0
    %114 = vmatpush.msra.mxu0 0.0
    %115 = vmatpush.msra.mxu0 0.0
    %116 = vmatpush.msra.mxu0 0.0
    %117 = vmatpush.msra.mxu0 0.0
    %118 = vmatpush.msra.mxu0 %v88
    %119 = vmatmul.f32.gmra.mxu0 %v98
    %v120 = vpop.f32.mrf.mxu0
    %v121 = vadd.f32 %v92, %v120
    %122 = vmatmul.f32.gmra.mxu0 %v101
    %v123 = vpop.f32.mrf.mxu0
    %v124 = vadd.f32 %v92, %v123
    %125 = vdwg.mxu0
    %126 = vmatpush.msra.mxu0 0.0
    %127 = vmatpush.msra.mxu0 0.0
    %128 = vmatpush.msra.mxu0 0.0
    %129 = vmatpush.msra.mxu0 0.0
    %130 = vmatpush.msra.mxu0 0.0
    %131 = vmatpush.msra.mxu0 0.0
    %132 = vmatpush.msra.mxu0 0.0
    %133 = vmatpush.msra.mxu0 0.0
    %134 = vmatpush.msra.mxu0 0.0
    %135 = vmatpush.msra.mxu0 0.0
    %136 = vmatpush.msra.mxu0 0.0
    %137 = vmatpush.msra.mxu0 0.0
    %138 = vmatpush.msra.mxu0 0.0
    %139 = vmatpush.msra.mxu0 0.0
    %140 = vmatpush.msra.mxu0 0.0
    %141 = vmatpush.msra.mxu0 %v89
    %142 = vmatmul.f32.gmra.mxu0 %v98
    %v143 = vpop.f32.mrf.mxu0
    %v144 = vadd.f32 %v93, %v143
    %145 = vmatmul.f32.gmra.mxu0 %v101
    %v146 = vpop.f32.mrf.mxu0
    %v147 = vadd.f32 %v93, %v146
    %148 = vdwg.mxu0
    %149 = vst [vmem:[#allocation3] sm:$0xff] %v121
    %150 = vst [vmem:[#allocation3 + $0x8] sm:$0xff] %v144
    %151 = vst [vmem:[#allocation3 + $0x10] sm:$0xff] %v124
    %152 = vst [vmem:[#allocation3 + $0x18] sm:$0xff] %v147
    %v153 = vld [vmem:[#allocation4] sm:$0xff]
    %v154 = vld [vmem:[#allocation4 + $0x8] sm:$0xff]
    %v155 = vld [vmem:[#allocation4 + $0x10] sm:$0xff]
    %v156 = vld [vmem:[#allocation4 + $0x18] sm:$0xff]
    %v157 = vld [vmem:[#allocation4 + $0x20] sm:$0xff]
    %v158 = vld [vmem:[#allocation4 + $0x28] sm:$0xff]
    %v159 = vld [vmem:[#allocation4 + $0x30] sm:$0xff]
    %v160 = vld [vmem:[#allocation4 + $0x38] sm:$0xff]
    %v161 = vld [vmem:[#allocation4 + $0x40] sm:$0xff]
    %v162 = vld [vmem:[#allocation4 + $0x48] sm:$0xff]
    %v163 = vld [vmem:[#allocation4 + $0x50] sm:$0xff]
    %v164 = vld [vmem:[#allocation4 + $0x58] sm:$0xff]
    %v165 = vld [vmem:[#allocation4 + $0x60] sm:$0xff]
    %v166 = vld [vmem:[#allocation4 + $0x68] sm:$0xff]
    %v167 = vld [vmem:[#allocation4 + $0x70] sm:$0xff]
    %v168 = vld [vmem:[#allocation4 + $0x78] sm:$0xff]
    %v169 = vld [vmem:[#allocation3] sm:$0x3]
    %v170 = vld [vmem:[#allocation3 + $0x8] sm:$0x3]
    %vm171 = vcmask 523264
    %v173 = vsel %vm171, 0.0, 0
    %175 = vmatpush.msra.mxu0 0.0
    %176 = vmatpush.msra.mxu0 0.0
    %177 = vmatpush.msra.mxu0 0.0
    %178 = vmatpush.msra.mxu0 0.0
    %179 = vmatpush.msra.mxu0 0.0
    %180 = vmatpush.msra.mxu0 0.0
    %181 = vmatpush.msra.mxu0 0.0
    %182 = vmatpush.msra.mxu0 0.0
    %183 = vmatpush.msra.mxu0 %v167
    %184 = vmatpush.msra.mxu0 %v165
    %185 = vmatpush.msra.mxu0 %v163
    %186 = vmatpush.msra.mxu0 %v161
    %187 = vmatpush.msra.mxu0 %v159
    %188 = vmatpush.msra.mxu0 %v157
    %189 = vmatpush.msra.mxu0 %v155
    %190 = vmatpush.msra.mxu0 %v153
    %191 = vmatmul.f32.gmra.mxu0 %v173
    %v192 = vpop.f32.mrf.mxu0
    %v193 = vadd.f32 0.0, %v192
    %194 = vdwg.mxu0
    %195 = vmatpush.msra.mxu0 0.0
    %196 = vmatpush.msra.mxu0 0.0
    %197 = vmatpush.msra.mxu0 0.0
    %198 = vmatpush.msra.mxu0 0.0
    %199 = vmatpush.msra.mxu0 0.0
    %200 = vmatpush.msra.mxu0 0.0
    %201 = vmatpush.msra.mxu0 0.0
    %202 = vmatpush.msra.mxu0 0.0
    %203 = vmatpush.msra.mxu0 %v168
    %204 = vmatpush.msra.mxu0 %v166
    %205 = vmatpush.msra.mxu0 %v164
    %206 = vmatpush.msra.mxu0 %v162
    %207 = vmatpush.msra.mxu0 %v160
    %208 = vmatpush.msra.mxu0 %v158
    %209 = vmatpush.msra.mxu0 %v156
    %210 = vmatpush.msra.mxu0 %v154
    %211 = vmatmul.f32.gmra.mxu0 %v173
    %v212 = vpop.f32.mrf.mxu0
    %v213 = vadd.f32 0.0, %v212
    %214 = vdwg.mxu0
    %v215 = vadd.f32 %v169, %v193
    %v216 = vadd.f32 %v170, %v213
    %v217 = vxor.u32 %v215, 2147483648
    %v218 = vxor.u32 %v216, 2147483648
    %v219 = vmul.f32 %v217, 1.442695
    %v220 = vpow.pop %v219
    %v221 = vmul.f32 %v218, 1.442695
    %v222 = vpow.pop %v221
    %v223 = vadd.f32 %v220, 1.0
    %v224 = vadd.f32 %v222, 1.0
    %v225 = vrcp.pop %v223
    %v226 = vmul.f32 %v223, %v225
    %v227 = vsub.f32 1.0, %v226
    %v228 = vmul.f32 %v225, %v227
    %v229 = vadd.f32 %v225, %v228
    %vm230 = vweird.f32 %v223
    %vm231 = vweird.f32 %v225
    %vm232 = vmor %vm230, %vm231
    %v233 = vsel %vm232, %v225, %v229
    %v234 = vand.u32 2147483647, %v223
    %vm235 = vcmp.eq.f32.partialorder %v234, 8.507059e+37
    %v236 = vand.u32 %v223, 2147483648
    %v237 = vor.u32 1.1754944e-38, %v236
    %v238 = vsel %vm235, %v237, %v233
    %v239 = vmul.f32 1.0, %v238
    %v240 = vrcp.pop %v224
    %v241 = vmul.f32 %v224, %v240
    %v242 = vsub.f32 1.0, %v241
    %v243 = vmul.f32 %v240, %v242
    %v244 = vadd.f32 %v240, %v243
    %vm245 = vweird.f32 %v224
    %vm246 = vweird.f32 %v240
    %vm247 = vmor %vm245, %vm246
    %v248 = vsel %vm247, %v240, %v244
    %v249 = vand.u32 2147483647, %v224
    %vm250 = vcmp.eq.f32.partialorder %v249, 8.507059e+37
    %v251 = vand.u32 %v224, 2147483648
    %v252 = vor.u32 1.1754944e-38, %v251
    %v253 = vsel %vm250, %v252, %v248
    %v254 = vmul.f32 1.0, %v253
    %v255 = vtanh.pop %v216
    %v256 = vmul.f32 %v239, 0.0
    %258 = vrot.lane.b32.xlu0 %v255, 64
    %v259 = vpop.permute.xlu0 %258
    %v261 = vmul.f32 %v239, %v259
    %263 = vrot.lane.b32.xlu0 %v261, 64
    %v264 = vpop.permute.xlu0 %263
    %v266 = vadd.f32 %v256, %v264
    %v267 = vtanh.pop %v266
    %269 = vrot.lane.b32.xlu0 %v267, 64
    %v270 = vpop.permute.xlu0 %269
    %v272 = vmul.f32 %v254, %v270
    %vm273 = vcmask 517120
    %274 = vst.msk [vmem:[#allocation2] sm:$0x3] %vm273, %v272
    %276 = vrot.lane.b32.xlu0 %v272, 64
    %v277 = vpop.permute.xlu0 %276
    %vm279 = vcmask 1041920
    %280 = vst.msk [vmem:[#allocation2 + $0xe] sm:$0x3] %vm279, %v277
    %v281 = vld [vmem:[#allocation3] sm:$0xc]
    %v282 = vld [vmem:[#allocation3 + $0x8] sm:$0xc]
    %v283 = vsel %vm171, %v272, 0
    %285 = vmatpush.msra.mxu0 0.0
    %286 = vmatpush.msra.mxu0 0.0
    %287 = vmatpush.msra.mxu0 0.0
    %288 = vmatpush.msra.mxu0 0.0
    %289 = vmatpush.msra.mxu0 0.0
    %290 = vmatpush.msra.mxu0 0.0
    %291 = vmatpush.msra.mxu0 0.0
    %292 = vmatpush.msra.mxu0 0.0
    %293 = vmatpush.msra.mxu0 %v167
    %294 = vmatpush.msra.mxu0 %v165
    %295 = vmatpush.msra.mxu0 %v163
    %296 = vmatpush.msra.mxu0 %v161
    %297 = vmatpush.msra.mxu0 %v159
    %298 = vmatpush.msra.mxu0 %v157
    %299 = vmatpush.msra.mxu0 %v155
    %300 = vmatpush.msra.mxu0 %v153
    %301 = vmatmul.f32.gmra.mxu0 %v283
    %v302 = vpop.f32.mrf.mxu0
    %v303 = vadd.f32 0.0, %v302
    %304 = vdwg.mxu0
    %305 = vmatpush.msra.mxu0 0.0
    %306 = vmatpush.msra.mxu0 0.0
    %307 = vmatpush.msra.mxu0 0.0
    %308 = vmatpush.msra.mxu0 0.0
    %309 = vmatpush.msra.mxu0 0.0
    %310 = vmatpush.msra.mxu0 0.0
    %311 = vmatpush.msra.mxu0 0.0
    %312 = vmatpush.msra.mxu0 0.0
    %313 = vmatpush.msra.mxu0 %v168
    %314 = vmatpush.msra.mxu0 %v166
    %315 = vmatpush.msra.mxu0 %v164
    %316 = vmatpush.msra.mxu0 %v162
    %317 = vmatpush.msra.mxu0 %v160
    %318 = vmatpush.msra.mxu0 %v158
    %319 = vmatpush.msra.mxu0 %v156
    %320 = vmatpush.msra.mxu0 %v154
    %321 = vmatmul.f32.gmra.mxu0 %v283
    %v322 = vpop.f32.mrf.mxu0
    %v323 = vadd.f32 0.0, %v322
    %324 = vdwg.mxu0
    %v327 = vrot.slane %v303, 6
    %v328 = vrot.slane %v323, 6
    %v331 = vadd.f32 %v281, %v327
    %v332 = vadd.f32 %v282, %v328
    %v333 = vxor.u32 %v331, 2147483648
    %v334 = vxor.u32 %v332, 2147483648
    %v335 = vmul.f32 %v333, 1.442695
    %v336 = vpow.pop %v335
    %v337 = vmul.f32 %v334, 1.442695
    %v338 = vpow.pop %v337
    %v339 = vadd.f32 %v336, 1.0
    %v340 = vadd.f32 %v338, 1.0
    %v341 = vrcp.pop %v339
    %v342 = vmul.f32 %v339, %v341
    %v343 = vsub.f32 1.0, %v342
    %v344 = vmul.f32 %v341, %v343
    %v345 = vadd.f32 %v341, %v344
    %vm346 = vweird.f32 %v339
    %vm347 = vweird.f32 %v341
    %vm348 = vmor %vm346, %vm347
    %v349 = vsel %vm348, %v341, %v345
    %v350 = vand.u32 2147483647, %v339
    %vm351 = vcmp.eq.f32.partialorder %v350, 8.507059e+37
    %v352 = vand.u32 %v339, 2147483648
    %v353 = vor.u32 1.1754944e-38, %v352
    %v354 = vsel %vm351, %v353, %v349
    %v355 = vmul.f32 1.0, %v354
    %v356 = vrcp.pop %v340
    %v357 = vmul.f32 %v340, %v356
    %v358 = vsub.f32 1.0, %v357
    %v359 = vmul.f32 %v356, %v358
    %v360 = vadd.f32 %v356, %v359
    %vm361 = vweird.f32 %v340
    %vm362 = vweird.f32 %v356
    %vm363 = vmor %vm361, %vm362
    %v364 = vsel %vm363, %v356, %v360
    %v365 = vand.u32 2147483647, %v340
    %vm366 = vcmp.eq.f32.partialorder %v365, 8.507059e+37
    %v367 = vand.u32 %v340, 2147483648
    %v368 = vor.u32 1.1754944e-38, %v367
    %v369 = vsel %vm366, %v368, %v364
    %v370 = vmul.f32 1.0, %v369
    %v371 = vtanh.pop %v332
    %v373 = vrot.slane %v266, 6
    %v375 = vmul.f32 %v355, %v373
    %377 = vrot.lane.b32.xlu0 %v371, 64
    %v378 = vpop.permute.xlu0 %377
    %v380 = vmul.f32 %v355, %v378
    %382 = vrot.lane.b32.xlu0 %v380, 64
    %v383 = vpop.permute.xlu0 %382
    %v385 = vadd.f32 %v375, %v383
    %v386 = vtanh.pop %v385
    %388 = vrot.lane.b32.xlu0 %v386, 64
    %v389 = vpop.permute.xlu0 %388
    %v391 = vmul.f32 %v370, %v389
    %vm392 = vcmask 519170
    %393 = vst.msk [vmem:[#allocation2] sm:$0xc] %vm392, %v391
    %395 = vrot.lane.b32.xlu0 %v391, 64
    %v396 = vpop.permute.xlu0 %395
    %vm398 = vcmask 1043970
    %399 = vst.msk [vmem:[#allocation2 + $0xa] sm:$0xc] %vm398, %v396
    %v400 = vld [vmem:[#allocation3] sm:$0x30]
    %v401 = vld [vmem:[#allocation3 + $0x8] sm:$0x30]
    %v402 = vrot.slane %v391, 2
    %v403 = vsel %vm171, %v402, 0
    %405 = vmatpush.msra.mxu0 0.0
    %406 = vmatpush.msra.mxu0 0.0
    %407 = vmatpush.msra.mxu0 0.0
    %408 = vmatpush.msra.mxu0 0.0
    %409 = vmatpush.msra.mxu0 0.0
    %410 = vmatpush.msra.mxu0 0.0
    %411 = vmatpush.msra.mxu0 0.0
    %412 = vmatpush.msra.mxu0 0.0
    %413 = vmatpush.msra.mxu0 %v167
    %414 = vmatpush.msra.mxu0 %v165
    %415 = vmatpush.msra.mxu0 %v163
    %416 = vmatpush.msra.mxu0 %v161
    %417 = vmatpush.msra.mxu0 %v159
    %418 = vmatpush.msra.mxu0 %v157
    %419 = vmatpush.msra.mxu0 %v155
    %420 = vmatpush.msra.mxu0 %v153
    %421 = vmatmul.f32.gmra.mxu0 %v403
    %v422 = vpop.f32.mrf.mxu0
    %v423 = vadd.f32 0.0, %v422
    %424 = vdwg.mxu0
    %425 = vmatpush.msra.mxu0 0.0
    %426 = vmatpush.msra.mxu0 0.0
    %427 = vmatpush.msra.mxu0 0.0
    %428 = vmatpush.msra.mxu0 0.0
    %429 = vmatpush.msra.mxu0 0.0
    %430 = vmatpush.msra.mxu0 0.0
    %431 = vmatpush.msra.mxu0 0.0
    %432 = vmatpush.msra.mxu0 0.0
    %433 = vmatpush.msra.mxu0 %v168
    %434 = vmatpush.msra.mxu0 %v166
    %435 = vmatpush.msra.mxu0 %v164
    %436 = vmatpush.msra.mxu0 %v162
    %437 = vmatpush.msra.mxu0 %v160
    %438 = vmatpush.msra.mxu0 %v158
    %439 = vmatpush.msra.mxu0 %v156
    %440 = vmatpush.msra.mxu0 %v154
    %441 = vmatmul.f32.gmra.mxu0 %v403
    %v442 = vpop.f32.mrf.mxu0
    %v443 = vadd.f32 0.0, %v442
    %444 = vdwg.mxu0
    %v447 = vrot.slane %v423, 4
    %v448 = vrot.slane %v443, 4
    %v451 = vadd.f32 %v400, %v447
    %v452 = vadd.f32 %v401, %v448
    %v453 = vxor.u32 %v451, 2147483648
    %v454 = vxor.u32 %v452, 2147483648
    %v455 = vmul.f32 %v453, 1.442695
    %v456 = vpow.pop %v455
    %v457 = vmul.f32 %v454, 1.442695
    %v458 = vpow.pop %v457
    %v459 = vadd.f32 %v456, 1.0
    %v460 = vadd.f32 %v458, 1.0
    %v461 = vrcp.pop %v459
    %v462 = vmul.f32 %v459, %v461
    %v463 = vsub.f32 1.0, %v462
    %v464 = vmul.f32 %v461, %v463
    %v465 = vadd.f32 %v461, %v464
    %vm466 = vweird.f32 %v459
    %vm467 = vweird.f32 %v461
    %vm468 = vmor %vm466, %vm467
    %v469 = vsel %vm468, %v461, %v465
    %v470 = vand.u32 2147483647, %v459
    %vm471 = vcmp.eq.f32.partialorder %v470, 8.507059e+37
    %v472 = vand.u32 %v459, 2147483648
    %v473 = vor.u32 1.1754944e-38, %v472
    %v474 = vsel %vm471, %v473, %v469
    %v475 = vmul.f32 1.0, %v474
    %v476 = vrcp.pop %v460
    %v477 = vmul.f32 %v460, %v476
    %v478 = vsub.f32 1.0, %v477
    %v479 = vmul.f32 %v476, %v478
    %v480 = vadd.f32 %v476, %v479
    %vm481 = vweird.f32 %v460
    %vm482 = vweird.f32 %v476
    %vm483 = vmor %vm481, %vm482
    %v484 = vsel %vm483, %v476, %v480
    %v485 = vand.u32 2147483647, %v460
    %vm486 = vcmp.eq.f32.partialorder %v485, 8.507059e+37
    %v487 = vand.u32 %v460, 2147483648
    %v488 = vor.u32 1.1754944e-38, %v487
    %v489 = vsel %vm486, %v488, %v484
    %v490 = vmul.f32 1.0, %v489
    %v491 = vtanh.pop %v452
    %v493 = vrot.slane %v385, 6
    %v495 = vmul.f32 %v475, %v493
    %497 = vrot.lane.b32.xlu0 %v491, 64
    %v498 = vpop.permute.xlu0 %497
    %v500 = vmul.f32 %v475, %v498
    %502 = vrot.lane.b32.xlu0 %v500, 64
    %v503 = vpop.permute.xlu0 %502
    %v505 = vadd.f32 %v495, %v503
    %v506 = vtanh.pop %v505
    %508 = vrot.lane.b32.xlu0 %v506, 64
    %v509 = vpop.permute.xlu0 %508
    %v511 = vmul.f32 %v490, %v509
    %vm512 = vcmask 521220
    %513 = vst.msk [vmem:[#allocation2] sm:$0x30] %vm512, %v511
    %515 = vrot.lane.b32.xlu0 %v511, 64
    %v516 = vpop.permute.xlu0 %515
    %vm518 = vcmask 1046020
    %519 = vst.msk [vmem:[#allocation2 + $0x6] sm:$0x30] %vm518, %v516
    %v520 = vld [vmem:[#allocation3] sm:$0xc0]
    %v521 = vld [vmem:[#allocation3 + $0x8] sm:$0xc0]
    %v522 = vrot.slane %v511, 4
    %v523 = vsel %vm171, %v522, 0
    %525 = vmatpush.msra.mxu0 0.0
    %526 = vmatpush.msra.mxu0 0.0
    %527 = vmatpush.msra.mxu0 0.0
    %528 = vmatpush.msra.mxu0 0.0
    %529 = vmatpush.msra.mxu0 0.0
    %530 = vmatpush.msra.mxu0 0.0
    %531 = vmatpush.msra.mxu0 0.0
    %532 = vmatpush.msra.mxu0 0.0
    %533 = vmatpush.msra.mxu0 %v167
    %534 = vmatpush.msra.mxu0 %v165
    %535 = vmatpush.msra.mxu0 %v163
    %536 = vmatpush.msra.mxu0 %v161
    %537 = vmatpush.msra.mxu0 %v159
    %538 = vmatpush.msra.mxu0 %v157
    %539 = vmatpush.msra.mxu0 %v155
    %540 = vmatpush.msra.mxu0 %v153
    %541 = vmatmul.f32.gmra.mxu0 %v523
    %v542 = vpop.f32.mrf.mxu0
    %v543 = vadd.f32 0.0, %v542
    %544 = vdwg.mxu0
    %545 = vmatpush.msra.mxu0 0.0
    %546 = vmatpush.msra.mxu0 0.0
    %547 = vmatpush.msra.mxu0 0.0
    %548 = vmatpush.msra.mxu0 0.0
    %549 = vmatpush.msra.mxu0 0.0
    %550 = vmatpush.msra.mxu0 0.0
    %551 = vmatpush.msra.mxu0 0.0
    %552 = vmatpush.msra.mxu0 0.0
    %553 = vmatpush.msra.mxu0 %v168
    %554 = vmatpush.msra.mxu0 %v166
    %555 = vmatpush.msra.mxu0 %v164
    %556 = vmatpush.msra.mxu0 %v162
    %557 = vmatpush.msra.mxu0 %v160
    %558 = vmatpush.msra.mxu0 %v158
    %559 = vmatpush.msra.mxu0 %v156
    %560 = vmatpush.msra.mxu0 %v154
    %561 = vmatmul.f32.gmra.mxu0 %v523
    %v562 = vpop.f32.mrf.mxu0
    %v563 = vadd.f32 0.0, %v562
    %564 = vdwg.mxu0
    %v567 = vrot.slane %v543, 2
    %v568 = vrot.slane %v563, 2
    %v571 = vadd.f32 %v520, %v567
    %v572 = vadd.f32 %v521, %v568
    %v573 = vxor.u32 %v571, 2147483648
    %v574 = vxor.u32 %v572, 2147483648
    %v575 = vmul.f32 %v573, 1.442695
    %v576 = vpow.pop %v575
    %v577 = vmul.f32 %v574, 1.442695
    %v578 = vpow.pop %v577
    %v579 = vadd.f32 %v576, 1.0
    %v580 = vadd.f32 %v578, 1.0
    %v581 = vrcp.pop %v579
    %v582 = vmul.f32 %v579, %v581
    %v583 = vsub.f32 1.0, %v582
    %v584 = vmul.f32 %v581, %v583
    %v585 = vadd.f32 %v581, %v584
    %vm586 = vweird.f32 %v579
    %vm587 = vweird.f32 %v581
    %vm588 = vmor %vm586, %vm587
    %v589 = vsel %vm588, %v581, %v585
    %v590 = vand.u32 2147483647, %v579
    %vm591 = vcmp.eq.f32.partialorder %v590, 8.507059e+37
    %v592 = vand.u32 %v579, 2147483648
    %v593 = vor.u32 1.1754944e-38, %v592
    %v594 = vsel %vm591, %v593, %v589
    %v595 = vmul.f32 1.0, %v594
    %v596 = vrcp.pop %v580
    %v597 = vmul.f32 %v580, %v596
    %v598 = vsub.f32 1.0, %v597
    %v599 = vmul.f32 %v596, %v598
    %v600 = vadd.f32 %v596, %v599
    %vm601 = vweird.f32 %v580
    %vm602 = vweird.f32 %v596
    %vm603 = vmor %vm601, %vm602
    %v604 = vsel %vm603, %v596, %v600
    %v605 = vand.u32 2147483647, %v580
    %vm606 = vcmp.eq.f32.partialorder %v605, 8.507059e+37
    %v607 = vand.u32 %v580, 2147483648
    %v608 = vor.u32 1.1754944e-38, %v607
    %v609 = vsel %vm606, %v608, %v604
    %v610 = vmul.f32 1.0, %v609
    %v611 = vtanh.pop %v572
    %v613 = vrot.slane %v505, 6
    %v615 = vmul.f32 %v595, %v613
    %617 = vrot.lane.b32.xlu0 %v611, 64
    %v618 = vpop.permute.xlu0 %617
    %v620 = vmul.f32 %v595, %v618
    %622 = vrot.lane.b32.xlu0 %v620, 64
    %v623 = vpop.permute.xlu0 %622
    %v625 = vadd.f32 %v615, %v623
    %v626 = vtanh.pop %v625
    %628 = vrot.lane.b32.xlu0 %v626, 64
    %v629 = vpop.permute.xlu0 %628
    %v631 = vmul.f32 %v610, %v629
    %vm632 = vcmask 523270
    %633 = vst.msk [vmem:[#allocation2] sm:$0xc0] %vm632, %v631
    %635 = vrot.lane.b32.xlu0 %v631, 64
    %v636 = vpop.permute.xlu0 %635
    %vm638 = vcmask 1048070
    %639 = vst.msk [vmem:[#allocation2 + $0x2] sm:$0xc0] %vm638, %v636
    %v640 = vld [vmem:[#allocation3 + $0x10] sm:$0x3]
    %v641 = vld [vmem:[#allocation3 + $0x18] sm:$0x3]
    %v642 = vrot.slane %v631, 6
    %v643 = vsel %vm171, %v642, 0
    %645 = vmatpush.msra.mxu0 0.0
    %646 = vmatpush.msra.mxu0 0.0
    %647 = vmatpush.msra.mxu0 0.0
    %648 = vmatpush.msra.mxu0 0.0
    %649 = vmatpush.msra.mxu0 0.0
    %650 = vmatpush.msra.mxu0 0.0
    %651 = vmatpush.msra.mxu0 0.0
    %652 = vmatpush.msra.mxu0 0.0
    %653 = vmatpush.msra.mxu0 %v167
    %654 = vmatpush.msra.mxu0 %v165
    %655 = vmatpush.msra.mxu0 %v163
    %656 = vmatpush.msra.mxu0 %v161
    %657 = vmatpush.msra.mxu0 %v159
    %658 = vmatpush.msra.mxu0 %v157
    %659 = vmatpush.msra.mxu0 %v155
    %660 = vmatpush.msra.mxu0 %v153
    %661 = vmatmul.f32.gmra.mxu0 %v643
    %v662 = vpop.f32.mrf.mxu0
    %v663 = vadd.f32 0.0, %v662
    %664 = vdwg.mxu0
    %665 = vmatpush.msra.mxu0 0.0
    %666 = vmatpush.msra.mxu0 0.0
    %667 = vmatpush.msra.mxu0 0.0
    %668 = vmatpush.msra.mxu0 0.0
    %669 = vmatpush.msra.mxu0 0.0
    %670 = vmatpush.msra.mxu0 0.0
    %671 = vmatpush.msra.mxu0 0.0
    %672 = vmatpush.msra.mxu0 0.0
    %673 = vmatpush.msra.mxu0 %v168
    %674 = vmatpush.msra.mxu0 %v166
    %675 = vmatpush.msra.mxu0 %v164
    %676 = vmatpush.msra.mxu0 %v162
    %677 = vmatpush.msra.mxu0 %v160
    %678 = vmatpush.msra.mxu0 %v158
    %679 = vmatpush.msra.mxu0 %v156
    %680 = vmatpush.msra.mxu0 %v154
    %681 = vmatmul.f32.gmra.mxu0 %v643
    %v682 = vpop.f32.mrf.mxu0
    %v683 = vadd.f32 0.0, %v682
    %684 = vdwg.mxu0
    %v685 = vadd.f32 %v640, %v663
    %v686 = vadd.f32 %v641, %v683
    %v687 = vxor.u32 %v685, 2147483648
    %v688 = vxor.u32 %v686, 2147483648
    %v689 = vmul.f32 %v687, 1.442695
    %v690 = vpow.pop %v689
    %v691 = vmul.f32 %v688, 1.442695
    %v692 = vpow.pop %v691
    %v693 = vadd.f32 %v690, 1.0
    %v694 = vadd.f32 %v692, 1.0
    %v695 = vrcp.pop %v693
    %v696 = vmul.f32 %v693, %v695
    %v697 = vsub.f32 1.0, %v696
    %v698 = vmul.f32 %v695, %v697
    %v699 = vadd.f32 %v695, %v698
    %vm700 = vweird.f32 %v693
    %vm701 = vweird.f32 %v695
    %vm702 = vmor %vm700, %vm701
    %v703 = vsel %vm702, %v695, %v699
    %v704 = vand.u32 2147483647, %v693
    %vm705 = vcmp.eq.f32.partialorder %v704, 8.507059e+37
    %v706 = vand.u32 %v693, 2147483648
    %v707 = vor.u32 1.1754944e-38, %v706
    %v708 = vsel %vm705, %v707, %v703
    %v709 = vmul.f32 1.0, %v708
    %v710 = vrcp.pop %v694
    %v711 = vmul.f32 %v694, %v710
    %v712 = vsub.f32 1.0, %v711
    %v713 = vmul.f32 %v710, %v712
    %v714 = vadd.f32 %v710, %v713
    %vm715 = vweird.f32 %v694
    %vm716 = vweird.f32 %v710
    %vm717 = vmor %vm715, %vm716
    %v718 = vsel %vm717, %v710, %v714
    %v719 = vand.u32 2147483647, %v694
    %vm720 = vcmp.eq.f32.partialorder %v719, 8.507059e+37
    %v721 = vand.u32 %v694, 2147483648
    %v722 = vor.u32 1.1754944e-38, %v721
    %v723 = vsel %vm720, %v722, %v718
    %v724 = vmul.f32 1.0, %v723
    %v725 = vtanh.pop %v686
    %v727 = vrot.slane %v625, 6
    %v729 = vmul.f32 %v709, %v727
    %731 = vrot.lane.b32.xlu0 %v725, 64
    %v732 = vpop.permute.xlu0 %731
    %v734 = vmul.f32 %v709, %v732
    %736 = vrot.lane.b32.xlu0 %v734, 64
    %v737 = vpop.permute.xlu0 %736
    %v739 = vadd.f32 %v729, %v737
    %v740 = vtanh.pop %v739
    %742 = vrot.lane.b32.xlu0 %v740, 64
    %v743 = vpop.permute.xlu0 %742
    %v745 = vmul.f32 %v724, %v743
    %746 = vst.msk [vmem:[#allocation2 + $0x8] sm:$0x3] %vm273, %v745
    %748 = vrot.lane.b32.xlu0 %v745, 64
    %v749 = vpop.permute.xlu0 %748
    %751 = vst.msk [vmem:[#allocation2 + $0x6] sm:$0x3] %vm279, %v749
    %v752 = vld [vmem:[#allocation3 + $0x10] sm:$0xc]
    %v753 = vld [vmem:[#allocation3 + $0x18] sm:$0xc]
    %v754 = vsel %vm171, %v745, 0
    %756 = vmatpush.msra.mxu0 0.0
    %757 = vmatpush.msra.mxu0 0.0
    %758 = vmatpush.msra.mxu0 0.0
    %759 = vmatpush.msra.mxu0 0.0
    %760 = vmatpush.msra.mxu0 0.0
    %761 = vmatpush.msra.mxu0 0.0
    %762 = vmatpush.msra.mxu0 0.0
    %763 = vmatpush.msra.mxu0 0.0
    %764 = vmatpush.msra.mxu0 %v167
    %765 = vmatpush.msra.mxu0 %v165
    %766 = vmatpush.msra.mxu0 %v163
    %767 = vmatpush.msra.mxu0 %v161
    %768 = vmatpush.msra.mxu0 %v159
    %769 = vmatpush.msra.mxu0 %v157
    %770 = vmatpush.msra.mxu0 %v155
    %771 = vmatpush.msra.mxu0 %v153
    %772 = vmatmul.f32.gmra.mxu0 %v754
    %v773 = vpop.f32.mrf.mxu0
    %v774 = vadd.f32 0.0, %v773
    %775 = vdwg.mxu0
    %776 = vmatpush.msra.mxu0 0.0
    %777 = vmatpush.msra.mxu0 0.0
    %778 = vmatpush.msra.mxu0 0.0
    %779 = vmatpush.msra.mxu0 0.0
    %780 = vmatpush.msra.mxu0 0.0
    %781 = vmatpush.msra.mxu0 0.0
    %782 = vmatpush.msra.mxu0 0.0
    %783 = vmatpush.msra.mxu0 0.0
    %784 = vmatpush.msra.mxu0 %v168
    %785 = vmatpush.msra.mxu0 %v166
    %786 = vmatpush.msra.mxu0 %v164
    %787 = vmatpush.msra.mxu0 %v162
    %788 = vmatpush.msra.mxu0 %v160
    %789 = vmatpush.msra.mxu0 %v158
    %790 = vmatpush.msra.mxu0 %v156
    %791 = vmatpush.msra.mxu0 %v154
    %792 = vmatmul.f32.gmra.mxu0 %v754
    %v793 = vpop.f32.mrf.mxu0
    %v794 = vadd.f32 0.0, %v793
    %795 = vdwg.mxu0
    %v798 = vrot.slane %v774, 6
    %v799 = vrot.slane %v794, 6
    %v802 = vadd.f32 %v752, %v798
    %v803 = vadd.f32 %v753, %v799
    %v804 = vxor.u32 %v802, 2147483648
    %v805 = vxor.u32 %v803, 2147483648
    %v806 = vmul.f32 %v804, 1.442695
    %v807 = vpow.pop %v806
    %v808 = vmul.f32 %v805, 1.442695
    %v809 = vpow.pop %v808
    %v810 = vadd.f32 %v807, 1.0
    %v811 = vadd.f32 %v809, 1.0
    %v812 = vrcp.pop %v810
    %v813 = vmul.f32 %v810, %v812
    %v814 = vsub.f32 1.0, %v813
    %v815 = vmul.f32 %v812, %v814
    %v816 = vadd.f32 %v812, %v815
    %vm817 = vweird.f32 %v810
    %vm818 = vweird.f32 %v812
    %vm819 = vmor %vm817, %vm818
    %v820 = vsel %vm819, %v812, %v816
    %v821 = vand.u32 2147483647, %v810
    %vm822 = vcmp.eq.f32.partialorder %v821, 8.507059e+37
    %v823 = vand.u32 %v810, 2147483648
    %v824 = vor.u32 1.1754944e-38, %v823
    %v825 = vsel %vm822, %v824, %v820
    %v826 = vmul.f32 1.0, %v825
    %v827 = vrcp.pop %v811
    %v828 = vmul.f32 %v811, %v827
    %v829 = vsub.f32 1.0, %v828
    %v830 = vmul.f32 %v827, %v829
    %v831 = vadd.f32 %v827, %v830
    %vm832 = vweird.f32 %v811
    %vm833 = vweird.f32 %v827
    %vm834 = vmor %vm832, %vm833
    %v835 = vsel %vm834, %v827, %v831
    %v836 = vand.u32 2147483647, %v811
    %vm837 = vcmp.eq.f32.partialorder %v836, 8.507059e+37
    %v838 = vand.u32 %v811, 2147483648
    %v839 = vor.u32 1.1754944e-38, %v838
    %v840 = vsel %vm837, %v839, %v835
    %v841 = vmul.f32 1.0, %v840
    %v842 = vtanh.pop %v803
    %v844 = vrot.slane %v739, 6
    %v846 = vmul.f32 %v826, %v844
    %848 = vrot.lane.b32.xlu0 %v842, 64
    %v849 = vpop.permute.xlu0 %848
    %v851 = vmul.f32 %v826, %v849
    %853 = vrot.lane.b32.xlu0 %v851, 64
    %v854 = vpop.permute.xlu0 %853
    %v856 = vadd.f32 %v846, %v854
    %v857 = vtanh.pop %v856
    %859 = vrot.lane.b32.xlu0 %v857, 64
    %v860 = vpop.permute.xlu0 %859
    %v862 = vmul.f32 %v841, %v860
    %863 = vst.msk [vmem:[#allocation2 + $0x8] sm:$0xc] %vm392, %v862
    %865 = vrot.lane.b32.xlu0 %v862, 64
    %v866 = vpop.permute.xlu0 %865
    %868 = vst.msk [vmem:[#allocation2 + $0x2] sm:$0xc] %vm398, %v866
    %v869 = vld [vmem:[#allocation3 + $0x10] sm:$0x30]
    %v870 = vld [vmem:[#allocation3 + $0x18] sm:$0x30]
    %v871 = vrot.slane %v862, 2
    %v872 = vsel %vm171, %v871, 0
    %874 = vmatpush.msra.mxu0 0.0
    %875 = vmatpush.msra.mxu0 0.0
    %876 = vmatpush.msra.mxu0 0.0
    %877 = vmatpush.msra.mxu0 0.0
    %878 = vmatpush.msra.mxu0 0.0
    %879 = vmatpush.msra.mxu0 0.0
    %880 = vmatpush.msra.mxu0 0.0
    %881 = vmatpush.msra.mxu0 0.0
    %882 = vmatpush.msra.mxu0 %v167
    %883 = vmatpush.msra.mxu0 %v165
    %884 = vmatpush.msra.mxu0 %v163
    %885 = vmatpush.msra.mxu0 %v161
    %886 = vmatpush.msra.mxu0 %v159
    %887 = vmatpush.msra.mxu0 %v157
    %888 = vmatpush.msra.mxu0 %v155
    %889 = vmatpush.msra.mxu0 %v153
    %890 = vmatmul.f32.gmra.mxu0 %v872
    %v891 = vpop.f32.mrf.mxu0
    %v892 = vadd.f32 0.0, %v891
    %893 = vdwg.mxu0
    %894 = vmatpush.msra.mxu0 0.0
    %895 = vmatpush.msra.mxu0 0.0
    %896 = vmatpush.msra.mxu0 0.0
    %897 = vmatpush.msra.mxu0 0.0
    %898 = vmatpush.msra.mxu0 0.0
    %899 = vmatpush.msra.mxu0 0.0
    %900 = vmatpush.msra.mxu0 0.0
    %901 = vmatpush.msra.mxu0 0.0
    %902 = vmatpush.msra.mxu0 %v168
    %903 = vmatpush.msra.mxu0 %v166
    %904 = vmatpush.msra.mxu0 %v164
    %905 = vmatpush.msra.mxu0 %v162
    %906 = vmatpush.msra.mxu0 %v160
    %907 = vmatpush.msra.mxu0 %v158
    %908 = vmatpush.msra.mxu0 %v156
    %909 = vmatpush.msra.mxu0 %v154
    %910 = vmatmul.f32.gmra.mxu0 %v872
    %v911 = vpop.f32.mrf.mxu0
    %v912 = vadd.f32 0.0, %v911
    %913 = vdwg.mxu0
    %v916 = vrot.slane %v892, 4
    %v917 = vrot.slane %v912, 4
    %v920 = vadd.f32 %v869, %v916
    %v921 = vadd.f32 %v870, %v917
    %v922 = vxor.u32 %v920, 2147483648
    %v923 = vxor.u32 %v921, 2147483648
    %v924 = vmul.f32 %v922, 1.442695
    %v925 = vpow.pop %v924
    %v926 = vmul.f32 %v923, 1.442695
    %v927 = vpow.pop %v926
    %v928 = vadd.f32 %v925, 1.0
    %v929 = vadd.f32 %v927, 1.0
    %v930 = vrcp.pop %v928
    %v931 = vmul.f32 %v928, %v930
    %v932 = vsub.f32 1.0, %v931
    %v933 = vmul.f32 %v930, %v932
    %v934 = vadd.f32 %v930, %v933
    %vm935 = vweird.f32 %v928
    %vm936 = vweird.f32 %v930
    %vm937 = vmor %vm935, %vm936
    %v938 = vsel %vm937, %v930, %v934
    %v939 = vand.u32 2147483647, %v928
    %vm940 = vcmp.eq.f32.partialorder %v939, 8.507059e+37
    %v941 = vand.u32 %v928, 2147483648
    %v942 = vor.u32 1.1754944e-38, %v941
    %v943 = vsel %vm940, %v942, %v938
    %v944 = vmul.f32 1.0, %v943
    %v945 = vrcp.pop %v929
    %v946 = vmul.f32 %v929, %v945
    %v947 = vsub.f32 1.0, %v946
    %v948 = vmul.f32 %v945, %v947
    %v949 = vadd.f32 %v945, %v948
    %vm950 = vweird.f32 %v929
    %vm951 = vweird.f32 %v945
    %vm952 = vmor %vm950, %vm951
    %v953 = vsel %vm952, %v945, %v949
    %v954 = vand.u32 2147483647, %v929
    %vm955 = vcmp.eq.f32.partialorder %v954, 8.507059e+37
    %v956 = vand.u32 %v929, 2147483648
    %v957 = vor.u32 1.1754944e-38, %v956
    %v958 = vsel %vm955, %v957, %v953
    %v959 = vmul.f32 1.0, %v958
    %v960 = vtanh.pop %v921
    %v962 = vrot.slane %v856, 6
    %v964 = vmul.f32 %v944, %v962
    %966 = vrot.lane.b32.xlu0 %v960, 64
    %v967 = vpop.permute.xlu0 %966
    %v969 = vmul.f32 %v944, %v967
    %971 = vrot.lane.b32.xlu0 %v969, 64
    %v972 = vpop.permute.xlu0 %971
    %v974 = vadd.f32 %v964, %v972
    %v975 = vtanh.pop %v974
    %977 = vrot.lane.b32.xlu0 %v975, 64
    %v978 = vpop.permute.xlu0 %977
    %v980 = vmul.f32 %v959, %v978
    %981 = vst.msk [vmem:[#allocation2 + $0x8] sm:$0x30] %vm512, %v980
    %983 = vrot.lane.b32.xlu0 %v980, 64
    %v984 = vpop.permute.xlu0 %983
    %986 = vst.msk [vmem:[#allocation2 - $0x2] sm:$0x30] %vm518, %v984
    %v987 = vld [vmem:[#allocation3 + $0x10] sm:$0xc0]
    %v988 = vld [vmem:[#allocation3 + $0x18] sm:$0xc0]
    %v989 = vrot.slane %v980, 4
    %v990 = vsel %vm171, %v989, 0
    %992 = vmatpush.msra.mxu0 0.0
    %993 = vmatpush.msra.mxu0 0.0
    %994 = vmatpush.msra.mxu0 0.0
    %995 = vmatpush.msra.mxu0 0.0
    %996 = vmatpush.msra.mxu0 0.0
    %997 = vmatpush.msra.mxu0 0.0
    %998 = vmatpush.msra.mxu0 0.0
    %999 = vmatpush.msra.mxu0 0.0
    %1000 = vmatpush.msra.mxu0 %v167
    %1001 = vmatpush.msra.mxu0 %v165
    %1002 = vmatpush.msra.mxu0 %v163
    %1003 = vmatpush.msra.mxu0 %v161
    %1004 = vmatpush.msra.mxu0 %v159
    %1005 = vmatpush.msra.mxu0 %v157
    %1006 = vmatpush.msra.mxu0 %v155
    %1007 = vmatpush.msra.mxu0 %v153
    %1008 = vmatmul.f32.gmra.mxu0 %v990
    %v1009 = vpop.f32.mrf.mxu0
    %v1010 = vadd.f32 0.0, %v1009
    %1011 = vdwg.mxu0
    %1012 = vmatpush.msra.mxu0 0.0
    %1013 = vmatpush.msra.mxu0 0.0
    %1014 = vmatpush.msra.mxu0 0.0
    %1015 = vmatpush.msra.mxu0 0.0
    %1016 = vmatpush.msra.mxu0 0.0
    %1017 = vmatpush.msra.mxu0 0.0
    %1018 = vmatpush.msra.mxu0 0.0
    %1019 = vmatpush.msra.mxu0 0.0
    %1020 = vmatpush.msra.mxu0 %v168
    %1021 = vmatpush.msra.mxu0 %v166
    %1022 = vmatpush.msra.mxu0 %v164
    %1023 = vmatpush.msra.mxu0 %v162
    %1024 = vmatpush.msra.mxu0 %v160
    %1025 = vmatpush.msra.mxu0 %v158
    %1026 = vmatpush.msra.mxu0 %v156
    %1027 = vmatpush.msra.mxu0 %v154
    %1028 = vmatmul.f32.gmra.mxu0 %v990
    %v1029 = vpop.f32.mrf.mxu0
    %v1030 = vadd.f32 0.0, %v1029
    %1031 = vdwg.mxu0
    %v1034 = vrot.slane %v1010, 2
    %v1035 = vrot.slane %v1030, 2
    %v1038 = vadd.f32 %v987, %v1034
    %v1039 = vadd.f32 %v988, %v1035
    %v1040 = vxor.u32 %v1038, 2147483648
    %v1041 = vxor.u32 %v1039, 2147483648
    %v1042 = vmul.f32 %v1040, 1.442695
    %v1043 = vpow.pop %v1042
    %v1044 = vmul.f32 %v1041, 1.442695
    %v1045 = vpow.pop %v1044
    %v1046 = vadd.f32 %v1043, 1.0
    %v1047 = vadd.f32 %v1045, 1.0
    %v1048 = vrcp.pop %v1046
    %v1049 = vmul.f32 %v1046, %v1048
    %v1050 = vsub.f32 1.0, %v1049
    %v1051 = vmul.f32 %v1048, %v1050
    %v1052 = vadd.f32 %v1048, %v1051
    %vm1053 = vweird.f32 %v1046
    %vm1054 = vweird.f32 %v1048
    %vm1055 = vmor %vm1053, %vm1054
    %v1056 = vsel %vm1055, %v1048, %v1052
    %v1057 = vand.u32 2147483647, %v1046
    %vm1058 = vcmp.eq.f32.partialorder %v1057, 8.507059e+37
    %v1059 = vand.u32 %v1046, 2147483648
    %v1060 = vor.u32 1.1754944e-38, %v1059
    %v1061 = vsel %vm1058, %v1060, %v1056
    %v1062 = vmul.f32 1.0, %v1061
    %v1063 = vrcp.pop %v1047
    %v1064 = vmul.f32 %v1047, %v1063
    %v1065 = vsub.f32 1.0, %v1064
    %v1066 = vmul.f32 %v1063, %v1065
    %v1067 = vadd.f32 %v1063, %v1066
    %vm1068 = vweird.f32 %v1047
    %vm1069 = vweird.f32 %v1063
    %vm1070 = vmor %vm1068, %vm1069
    %v1071 = vsel %vm1070, %v1063, %v1067
    %v1072 = vand.u32 2147483647, %v1047
    %vm1073 = vcmp.eq.f32.partialorder %v1072, 8.507059e+37
    %v1074 = vand.u32 %v1047, 2147483648
    %v1075 = vor.u32 1.1754944e-38, %v1074
    %v1076 = vsel %vm1073, %v1075, %v1071
    %v1077 = vmul.f32 1.0, %v1076
    %v1078 = vtanh.pop %v1039
    %v1080 = vrot.slane %v974, 6
    %v1082 = vmul.f32 %v1062, %v1080
    %1084 = vrot.lane.b32.xlu0 %v1078, 64
    %v1085 = vpop.permute.xlu0 %1084
    %v1087 = vmul.f32 %v1062, %v1085
    %1089 = vrot.lane.b32.xlu0 %v1087, 64
    %v1090 = vpop.permute.xlu0 %1089
    %v1092 = vadd.f32 %v1082, %v1090
    %v1093 = vtanh.pop %v1092
    %1095 = vrot.lane.b32.xlu0 %v1093, 64
    %v1096 = vpop.permute.xlu0 %1095
    %v1098 = vmul.f32 %v1077, %v1096
    %1099 = vst.msk [vmem:[#allocation2 + $0x8] sm:$0xc0] %vm632, %v1098
    %1101 = vrot.lane.b32.xlu0 %v1098, 64
    %v1102 = vpop.permute.xlu0 %1101
    %1104 = vst.msk [vmem:[#allocation2 - $0x6] sm:$0xc0] %vm638, %v1102
    %v1105 = vld [vmem:[#allocation2] sm:$0xff]
    %v1106 = vld [vmem:[#allocation2 + $0x8] sm:$0xff]
    %v1107 = vld [vmem:[#allocation7] sm:$0xff]
    %v1108 = vld [vmem:[#allocation7 + $0x8] sm:$0xff]
    %v1109 = vld [vmem:[#allocation7 + $0x10] sm:$0xff]
    %v1110 = vld [vmem:[#allocation7 + $0x18] sm:$0xff]
    %v1111 = vld [vmem:[#allocation7 + $0x20] sm:$0xff]
    %v1112 = vld [vmem:[#allocation7 + $0x28] sm:$0xff]
    %v1113 = vld [vmem:[#allocation7 + $0x30] sm:$0xff]
    %v1114 = vld [vmem:[#allocation7 + $0x38] sm:$0xff]
    %v1115 = vld [vmem:[#allocation7 + $0x40] sm:$0xff]
    %v1116 = vld [vmem:[#allocation7 + $0x48] sm:$0xff]
    %v1117 = vld [vmem:[#allocation7 + $0x50] sm:$0xff]
    %v1118 = vld [vmem:[#allocation7 + $0x58] sm:$0xff]
    %v1119 = vld [vmem:[#allocation7 + $0x60] sm:$0xff]
    %v1120 = vld [vmem:[#allocation7 + $0x68] sm:$0xff]
    %v1121 = vld [vmem:[#allocation7 + $0x70] sm:$0xff]
    %v1122 = vld [vmem:[#allocation7 + $0x78] sm:$0xff]
    %v1123 = vld [vmem:[#allocation7 + $0x80] sm:$0xff]
    %v1124 = vld [vmem:[#allocation7 + $0x88] sm:$0xff]
    %v1125 = vld [vmem:[#allocation7 + $0x90] sm:$0xff]
    %v1126 = vld [vmem:[#allocation7 + $0x98] sm:$0xff]
    %v1127 = vld [vmem:[#allocation7 + $0xa0] sm:$0xff]
    %v1128 = vld [vmem:[#allocation7 + $0xa8] sm:$0xff]
    %v1129 = vld [vmem:[#allocation7 + $0xb0] sm:$0xff]
    %v1130 = vld [vmem:[#allocation7 + $0xb8] sm:$0xff]
    %v1131 = vld [vmem:[#allocation7 + $0xc0] sm:$0xff]
    %v1132 = vld [vmem:[#allocation7 + $0xc8] sm:$0xff]
    %v1133 = vld [vmem:[#allocation7 + $0xd0] sm:$0xff]
    %v1134 = vld [vmem:[#allocation7 + $0xd8] sm:$0xff]
    %v1135 = vld [vmem:[#allocation7 + $0xe0] sm:$0xff]
    %v1136 = vld [vmem:[#allocation7 + $0xe8] sm:$0xff]
    %v1137 = vld [vmem:[#allocation7 + $0xf0] sm:$0xff]
    %v1138 = vld [vmem:[#allocation7 + $0xf8] sm:$0xff]
    %v1139 = vld [vmem:[%s6] sm:$0x3]
    %v1141 = vperm.slane %v1139, 0
    %v1142 = vperm.slane %v1139, 1
    %1145 = vmatpush.msra.mxu0 %v1137
    %1146 = vmatpush.msra.mxu0 %v1135
    %1147 = vmatpush.msra.mxu0 %v1133
    %1148 = vmatpush.msra.mxu0 %v1131
    %1149 = vmatpush.msra.mxu0 %v1129
    %1150 = vmatpush.msra.mxu0 %v1127
    %1151 = vmatpush.msra.mxu0 %v1125
    %1152 = vmatpush.msra.mxu0 %v1123
    %1153 = vmatpush.msra.mxu0 %v1121
    %1154 = vmatpush.msra.mxu0 %v1119
    %1155 = vmatpush.msra.mxu0 %v1117
    %1156 = vmatpush.msra.mxu0 %v1115
    %1157 = vmatpush.msra.mxu0 %v1113
    %1158 = vmatpush.msra.mxu0 %v1111
    %1159 = vmatpush.msra.mxu0 %v1109
    %1160 = vmatpush.msra.mxu0 %v1107
    %1161 = vmatmul.f32.gmra.mxu0 %v1105
    %v1162 = vpop.f32.mrf.mxu0
    %v1163 = vadd.f32 %v1141, %v1162
    %1164 = vmatmul.f32.gmra.mxu0 %v1106
    %v1165 = vpop.f32.mrf.mxu0
    %v1166 = vadd.f32 %v1141, %v1165
    %1167 = vdwg.mxu0
    %1168 = vmatpush.msra.mxu0 %v1138
    %1169 = vmatpush.msra.mxu0 %v1136
    %1170 = vmatpush.msra.mxu0 %v1134
    %1171 = vmatpush.msra.mxu0 %v1132
    %1172 = vmatpush.msra.mxu0 %v1130
    %1173 = vmatpush.msra.mxu0 %v1128
    %1174 = vmatpush.msra.mxu0 %v1126
    %1175 = vmatpush.msra.mxu0 %v1124
    %1176 = vmatpush.msra.mxu0 %v1122
    %1177 = vmatpush.msra.mxu0 %v1120
    %1178 = vmatpush.msra.mxu0 %v1118
    %1179 = vmatpush.msra.mxu0 %v1116
    %1180 = vmatpush.msra.mxu0 %v1114
    %1181 = vmatpush.msra.mxu0 %v1112
    %1182 = vmatpush.msra.mxu0 %v1110
    %1183 = vmatpush.msra.mxu0 %v1108
    %1184 = vmatmul.f32.gmra.mxu0 %v1105
    %v1185 = vpop.f32.mrf.mxu0
    %v1186 = vadd.f32 %v1142, %v1185
    %1187 = vmatmul.f32.gmra.mxu0 %v1106
    %v1188 = vpop.f32.mrf.mxu0
    %v1189 = vadd.f32 %v1142, %v1188
    %1190 = vdwg.mxu0
    %1191 = vst [vmem:[#allocation3] sm:$0xff] %v1163
    %1192 = vst [vmem:[#allocation3 + $0x8] sm:$0xff] %v1186
    %1193 = vst [vmem:[#allocation3 + $0x10] sm:$0xff] %v1166
    %1194 = vst [vmem:[#allocation3 + $0x18] sm:$0xff] %v1189
    %v1195 = vld [vmem:[#allocation9] sm:$0xff]
    %v1196 = vld [vmem:[#allocation9 + $0x8] sm:$0xff]
    %v1197 = vld [vmem:[#allocation9 + $0x10] sm:$0xff]
    %v1198 = vld [vmem:[#allocation9 + $0x18] sm:$0xff]
    %v1199 = vld [vmem:[#allocation9 + $0x20] sm:$0xff]
    %v1200 = vld [vmem:[#allocation9 + $0x28] sm:$0xff]
    %v1201 = vld [vmem:[#allocation9 + $0x30] sm:$0xff]
    %v1202 = vld [vmem:[#allocation9 + $0x38] sm:$0xff]
    %v1203 = vld [vmem:[#allocation9 + $0x40] sm:$0xff]
    %v1204 = vld [vmem:[#allocation9 + $0x48] sm:$0xff]
    %v1205 = vld [vmem:[#allocation9 + $0x50] sm:$0xff]
    %v1206 = vld [vmem:[#allocation9 + $0x58] sm:$0xff]
    %v1207 = vld [vmem:[#allocation9 + $0x60] sm:$0xff]
    %v1208 = vld [vmem:[#allocation9 + $0x68] sm:$0xff]
    %v1209 = vld [vmem:[#allocation9 + $0x70] sm:$0xff]
    %v1210 = vld [vmem:[#allocation9 + $0x78] sm:$0xff]
    %v1211 = vld [vmem:[#allocation3] sm:$0x3]
    %v1212 = vld [vmem:[#allocation3 + $0x8] sm:$0x3]
    %1213 = vmatpush.msra.mxu0 0.0
    %1214 = vmatpush.msra.mxu0 0.0
    %1215 = vmatpush.msra.mxu0 0.0
    %1216 = vmatpush.msra.mxu0 0.0
    %1217 = vmatpush.msra.mxu0 0.0
    %1218 = vmatpush.msra.mxu0 0.0
    %1219 = vmatpush.msra.mxu0 0.0
    %1220 = vmatpush.msra.mxu0 0.0
    %1221 = vmatpush.msra.mxu0 %v1209
    %1222 = vmatpush.msra.mxu0 %v1207
    %1223 = vmatpush.msra.mxu0 %v1205
    %1224 = vmatpush.msra.mxu0 %v1203
    %1225 = vmatpush.msra.mxu0 %v1201
    %1226 = vmatpush.msra.mxu0 %v1199
    %1227 = vmatpush.msra.mxu0 %v1197
    %1228 = vmatpush.msra.mxu0 %v1195
    %1229 = vmatmul.f32.gmra.mxu0 %v173
    %v1230 = vpop.f32.mrf.mxu0
    %v1231 = vadd.f32 0.0, %v1230
    %1232 = vdwg.mxu0
    %1233 = vmatpush.msra.mxu0 0.0
    %1234 = vmatpush.msra.mxu0 0.0
    %1235 = vmatpush.msra.mxu0 0.0
    %1236 = vmatpush.msra.mxu0 0.0
    %1237 = vmatpush.msra.mxu0 0.0
    %1238 = vmatpush.msra.mxu0 0.0
    %1239 = vmatpush.msra.mxu0 0.0
    %1240 = vmatpush.msra.mxu0 0.0
    %1241 = vmatpush.msra.mxu0 %v1210
    %1242 = vmatpush.msra.mxu0 %v1208
    %1243 = vmatpush.msra.mxu0 %v1206
    %1244 = vmatpush.msra.mxu0 %v1204
    %1245 = vmatpush.msra.mxu0 %v1202
    %1246 = vmatpush.msra.mxu0 %v1200
    %1247 = vmatpush.msra.mxu0 %v1198
    %1248 = vmatpush.msra.mxu0 %v1196
    %1249 = vmatmul.f32.gmra.mxu0 %v173
    %v1250 = vpop.f32.mrf.mxu0
    %v1251 = vadd.f32 0.0, %v1250
    %1252 = vdwg.mxu0
    %v1253 = vadd.f32 %v1211, %v1231
    %v1254 = vadd.f32 %v1212, %v1251
    %v1255 = vxor.u32 %v1253, 2147483648
    %v1256 = vxor.u32 %v1254, 2147483648
    %v1257 = vmul.f32 %v1255, 1.442695
    %v1258 = vpow.pop %v1257
    %v1259 = vmul.f32 %v1256, 1.442695
    %v1260 = vpow.pop %v1259
    %v1261 = vadd.f32 %v1258, 1.0
    %v1262 = vadd.f32 %v1260, 1.0
    %v1263 = vrcp.pop %v1261
    %v1264 = vmul.f32 %v1261, %v1263
    %v1265 = vsub.f32 1.0, %v1264
    %v1266 = vmul.f32 %v1263, %v1265
    %v1267 = vadd.f32 %v1263, %v1266
    %vm1268 = vweird.f32 %v1261
    %vm1269 = vweird.f32 %v1263
    %vm1270 = vmor %vm1268, %vm1269
    %v1271 = vsel %vm1270, %v1263, %v1267
    %v1272 = vand.u32 2147483647, %v1261
    %vm1273 = vcmp.eq.f32.partialorder %v1272, 8.507059e+37
    %v1274 = vand.u32 %v1261, 2147483648
    %v1275 = vor.u32 1.1754944e-38, %v1274
    %v1276 = vsel %vm1273, %v1275, %v1271
    %v1277 = vmul.f32 1.0, %v1276
    %v1278 = vrcp.pop %v1262
    %v1279 = vmul.f32 %v1262, %v1278
    %v1280 = vsub.f32 1.0, %v1279
    %v1281 = vmul.f32 %v1278, %v1280
    %v1282 = vadd.f32 %v1278, %v1281
    %vm1283 = vweird.f32 %v1262
    %vm1284 = vweird.f32 %v1278
    %vm1285 = vmor %vm1283, %vm1284
    %v1286 = vsel %vm1285, %v1278, %v1282
    %v1287 = vand.u32 2147483647, %v1262
    %vm1288 = vcmp.eq.f32.partialorder %v1287, 8.507059e+37
    %v1289 = vand.u32 %v1262, 2147483648
    %v1290 = vor.u32 1.1754944e-38, %v1289
    %v1291 = vsel %vm1288, %v1290, %v1286
    %v1292 = vmul.f32 1.0, %v1291
    %v1293 = vtanh.pop %v1254
    %v1294 = vmul.f32 %v1277, 0.0
    %1296 = vrot.lane.b32.xlu0 %v1293, 64
    %v1297 = vpop.permute.xlu0 %1296
    %v1299 = vmul.f32 %v1277, %v1297
    %1301 = vrot.lane.b32.xlu0 %v1299, 64
    %v1302 = vpop.permute.xlu0 %1301
    %v1304 = vadd.f32 %v1294, %v1302
    %v1305 = vtanh.pop %v1304
    %1307 = vrot.lane.b32.xlu0 %v1305, 64
    %v1308 = vpop.permute.xlu0 %1307
    %v1310 = vmul.f32 %v1292, %v1308
    %v1311 = vld [vmem:[#allocation3] sm:$0xc]
    %v1312 = vld [vmem:[#allocation3 + $0x8] sm:$0xc]
    %v1314 = vsel %vm171, %v1310, 0
    %1316 = vmatpush.msra.mxu0 0.0
    %1317 = vmatpush.msra.mxu0 0.0
    %1318 = vmatpush.msra.mxu0 0.0
    %1319 = vmatpush.msra.mxu0 0.0
    %1320 = vmatpush.msra.mxu0 0.0
    %1321 = vmatpush.msra.mxu0 0.0
    %1322 = vmatpush.msra.mxu0 0.0
    %1323 = vmatpush.msra.mxu0 0.0
    %1324 = vmatpush.msra.mxu0 %v1209
    %1325 = vmatpush.msra.mxu0 %v1207
    %1326 = vmatpush.msra.mxu0 %v1205
    %1327 = vmatpush.msra.mxu0 %v1203
    %1328 = vmatpush.msra.mxu0 %v1201
    %1329 = vmatpush.msra.mxu0 %v1199
    %1330 = vmatpush.msra.mxu0 %v1197
    %1331 = vmatpush.msra.mxu0 %v1195
    %1332 = vmatmul.f32.gmra.mxu0 %v1314
    %v1333 = vpop.f32.mrf.mxu0
    %v1334 = vadd.f32 0.0, %v1333
    %1335 = vdwg.mxu0
    %1336 = vmatpush.msra.mxu0 0.0
    %1337 = vmatpush.msra.mxu0 0.0
    %1338 = vmatpush.msra.mxu0 0.0
    %1339 = vmatpush.msra.mxu0 0.0
    %1340 = vmatpush.msra.mxu0 0.0
    %1341 = vmatpush.msra.mxu0 0.0
    %1342 = vmatpush.msra.mxu0 0.0
    %1343 = vmatpush.msra.mxu0 0.0
    %1344 = vmatpush.msra.mxu0 %v1210
    %1345 = vmatpush.msra.mxu0 %v1208
    %1346 = vmatpush.msra.mxu0 %v1206
    %1347 = vmatpush.msra.mxu0 %v1204
    %1348 = vmatpush.msra.mxu0 %v1202
    %1349 = vmatpush.msra.mxu0 %v1200
    %1350 = vmatpush.msra.mxu0 %v1198
    %1351 = vmatpush.msra.mxu0 %v1196
    %1352 = vmatmul.f32.gmra.mxu0 %v1314
    %v1353 = vpop.f32.mrf.mxu0
    %v1354 = vadd.f32 0.0, %v1353
    %1355 = vdwg.mxu0
    %v1358 = vrot.slane %v1334, 6
    %v1359 = vrot.slane %v1354, 6
    %v1362 = vadd.f32 %v1311, %v1358
    %v1363 = vadd.f32 %v1312, %v1359
    %v1364 = vxor.u32 %v1362, 2147483648
    %v1365 = vxor.u32 %v1363, 2147483648
    %v1366 = vmul.f32 %v1364, 1.442695
    %v1367 = vpow.pop %v1366
    %v1368 = vmul.f32 %v1365, 1.442695
    %v1369 = vpow.pop %v1368
    %v1370 = vadd.f32 %v1367, 1.0
    %v1371 = vadd.f32 %v1369, 1.0
    %v1372 = vrcp.pop %v1370
    %v1373 = vmul.f32 %v1370, %v1372
    %v1374 = vsub.f32 1.0, %v1373
    %v1375 = vmul.f32 %v1372, %v1374
    %v1376 = vadd.f32 %v1372, %v1375
    %vm1377 = vweird.f32 %v1370
    %vm1378 = vweird.f32 %v1372
    %vm1379 = vmor %vm1377, %vm1378
    %v1380 = vsel %vm1379, %v1372, %v1376
    %v1381 = vand.u32 2147483647, %v1370
    %vm1382 = vcmp.eq.f32.partialorder %v1381, 8.507059e+37
    %v1383 = vand.u32 %v1370, 2147483648
    %v1384 = vor.u32 1.1754944e-38, %v1383
    %v1385 = vsel %vm1382, %v1384, %v1380
    %v1386 = vmul.f32 1.0, %v1385
    %v1387 = vrcp.pop %v1371
    %v1388 = vmul.f32 %v1371, %v1387
    %v1389 = vsub.f32 1.0, %v1388
    %v1390 = vmul.f32 %v1387, %v1389
    %v1391 = vadd.f32 %v1387, %v1390
    %vm1392 = vweird.f32 %v1371
    %vm1393 = vweird.f32 %v1387
    %vm1394 = vmor %vm1392, %vm1393
    %v1395 = vsel %vm1394, %v1387, %v1391
    %v1396 = vand.u32 2147483647, %v1371
    %vm1397 = vcmp.eq.f32.partialorder %v1396, 8.507059e+37
    %v1398 = vand.u32 %v1371, 2147483648
    %v1399 = vor.u32 1.1754944e-38, %v1398
    %v1400 = vsel %vm1397, %v1399, %v1395
    %v1401 = vmul.f32 1.0, %v1400
    %v1402 = vtanh.pop %v1363
    %v1404 = vrot.slane %v1304, 6
    %v1406 = vmul.f32 %v1386, %v1404
    %1408 = vrot.lane.b32.xlu0 %v1402, 64
    %v1409 = vpop.permute.xlu0 %1408
    %v1411 = vmul.f32 %v1386, %v1409
    %1413 = vrot.lane.b32.xlu0 %v1411, 64
    %v1414 = vpop.permute.xlu0 %1413
    %v1416 = vadd.f32 %v1406, %v1414
    %v1417 = vtanh.pop %v1416
    %1419 = vrot.lane.b32.xlu0 %v1417, 64
    %v1420 = vpop.permute.xlu0 %1419
    %v1422 = vmul.f32 %v1401, %v1420
    %v1423 = vld [vmem:[#allocation3] sm:$0x30]
    %v1424 = vld [vmem:[#allocation3 + $0x8] sm:$0x30]
    %v1426 = vrot.slane %v1422, 2
    %v1427 = vsel %vm171, %v1426, 0
    %1429 = vmatpush.msra.mxu0 0.0
    %1430 = vmatpush.msra.mxu0 0.0
    %1431 = vmatpush.msra.mxu0 0.0
    %1432 = vmatpush.msra.mxu0 0.0
    %1433 = vmatpush.msra.mxu0 0.0
    %1434 = vmatpush.msra.mxu0 0.0
    %1435 = vmatpush.msra.mxu0 0.0
    %1436 = vmatpush.msra.mxu0 0.0
    %1437 = vmatpush.msra.mxu0 %v1209
    %1438 = vmatpush.msra.mxu0 %v1207
    %1439 = vmatpush.msra.mxu0 %v1205
    %1440 = vmatpush.msra.mxu0 %v1203
    %1441 = vmatpush.msra.mxu0 %v1201
    %1442 = vmatpush.msra.mxu0 %v1199
    %1443 = vmatpush.msra.mxu0 %v1197
    %1444 = vmatpush.msra.mxu0 %v1195
    %1445 = vmatmul.f32.gmra.mxu0 %v1427
    %v1446 = vpop.f32.mrf.mxu0
    %v1447 = vadd.f32 0.0, %v1446
    %1448 = vdwg.mxu0
    %1449 = vmatpush.msra.mxu0 0.0
    %1450 = vmatpush.msra.mxu0 0.0
    %1451 = vmatpush.msra.mxu0 0.0
    %1452 = vmatpush.msra.mxu0 0.0
    %1453 = vmatpush.msra.mxu0 0.0
    %1454 = vmatpush.msra.mxu0 0.0
    %1455 = vmatpush.msra.mxu0 0.0
    %1456 = vmatpush.msra.mxu0 0.0
    %1457 = vmatpush.msra.mxu0 %v1210
    %1458 = vmatpush.msra.mxu0 %v1208
    %1459 = vmatpush.msra.mxu0 %v1206
    %1460 = vmatpush.msra.mxu0 %v1204
    %1461 = vmatpush.msra.mxu0 %v1202
    %1462 = vmatpush.msra.mxu0 %v1200
    %1463 = vmatpush.msra.mxu0 %v1198
    %1464 = vmatpush.msra.mxu0 %v1196
    %1465 = vmatmul.f32.gmra.mxu0 %v1427
    %v1466 = vpop.f32.mrf.mxu0
    %v1467 = vadd.f32 0.0, %v1466
    %1468 = vdwg.mxu0
    %v1471 = vrot.slane %v1447, 4
    %v1472 = vrot.slane %v1467, 4
    %v1475 = vadd.f32 %v1423, %v1471
    %v1476 = vadd.f32 %v1424, %v1472
    %v1477 = vxor.u32 %v1475, 2147483648
    %v1478 = vxor.u32 %v1476, 2147483648
    %v1479 = vmul.f32 %v1477, 1.442695
    %v1480 = vpow.pop %v1479
    %v1481 = vmul.f32 %v1478, 1.442695
    %v1482 = vpow.pop %v1481
    %v1483 = vadd.f32 %v1480, 1.0
    %v1484 = vadd.f32 %v1482, 1.0
    %v1485 = vrcp.pop %v1483
    %v1486 = vmul.f32 %v1483, %v1485
    %v1487 = vsub.f32 1.0, %v1486
    %v1488 = vmul.f32 %v1485, %v1487
    %v1489 = vadd.f32 %v1485, %v1488
    %vm1490 = vweird.f32 %v1483
    %vm1491 = vweird.f32 %v1485
    %vm1492 = vmor %vm1490, %vm1491
    %v1493 = vsel %vm1492, %v1485, %v1489
    %v1494 = vand.u32 2147483647, %v1483
    %vm1495 = vcmp.eq.f32.partialorder %v1494, 8.507059e+37
    %v1496 = vand.u32 %v1483, 2147483648
    %v1497 = vor.u32 1.1754944e-38, %v1496
    %v1498 = vsel %vm1495, %v1497, %v1493
    %v1499 = vmul.f32 1.0, %v1498
    %v1500 = vrcp.pop %v1484
    %v1501 = vmul.f32 %v1484, %v1500
    %v1502 = vsub.f32 1.0, %v1501
    %v1503 = vmul.f32 %v1500, %v1502
    %v1504 = vadd.f32 %v1500, %v1503
    %vm1505 = vweird.f32 %v1484
    %vm1506 = vweird.f32 %v1500
    %vm1507 = vmor %vm1505, %vm1506
    %v1508 = vsel %vm1507, %v1500, %v1504
    %v1509 = vand.u32 2147483647, %v1484
    %vm1510 = vcmp.eq.f32.partialorder %v1509, 8.507059e+37
    %v1511 = vand.u32 %v1484, 2147483648
    %v1512 = vor.u32 1.1754944e-38, %v1511
    %v1513 = vsel %vm1510, %v1512, %v1508
    %v1514 = vmul.f32 1.0, %v1513
    %v1515 = vtanh.pop %v1476
    %v1517 = vrot.slane %v1416, 6
    %v1519 = vmul.f32 %v1499, %v1517
    %1521 = vrot.lane.b32.xlu0 %v1515, 64
    %v1522 = vpop.permute.xlu0 %1521
    %v1524 = vmul.f32 %v1499, %v1522
    %1526 = vrot.lane.b32.xlu0 %v1524, 64
    %v1527 = vpop.permute.xlu0 %1526
    %v1529 = vadd.f32 %v1519, %v1527
    %v1530 = vtanh.pop %v1529
    %1532 = vrot.lane.b32.xlu0 %v1530, 64
    %v1533 = vpop.permute.xlu0 %1532
    %v1535 = vmul.f32 %v1514, %v1533
    %v1536 = vld [vmem:[#allocation3] sm:$0xc0]
    %v1537 = vld [vmem:[#allocation3 + $0x8] sm:$0xc0]
    %v1539 = vrot.slane %v1535, 4
    %v1540 = vsel %vm171, %v1539, 0
    %1542 = vmatpush.msra.mxu0 0.0
    %1543 = vmatpush.msra.mxu0 0.0
    %1544 = vmatpush.msra.mxu0 0.0
    %1545 = vmatpush.msra.mxu0 0.0
    %1546 = vmatpush.msra.mxu0 0.0
    %1547 = vmatpush.msra.mxu0 0.0
    %1548 = vmatpush.msra.mxu0 0.0
    %1549 = vmatpush.msra.mxu0 0.0
    %1550 = vmatpush.msra.mxu0 %v1209
    %1551 = vmatpush.msra.mxu0 %v1207
    %1552 = vmatpush.msra.mxu0 %v1205
    %1553 = vmatpush.msra.mxu0 %v1203
    %1554 = vmatpush.msra.mxu0 %v1201
    %1555 = vmatpush.msra.mxu0 %v1199
    %1556 = vmatpush.msra.mxu0 %v1197
    %1557 = vmatpush.msra.mxu0 %v1195
    %1558 = vmatmul.f32.gmra.mxu0 %v1540
    %v1559 = vpop.f32.mrf.mxu0
    %v1560 = vadd.f32 0.0, %v1559
    %1561 = vdwg.mxu0
    %1562 = vmatpush.msra.mxu0 0.0
    %1563 = vmatpush.msra.mxu0 0.0
    %1564 = vmatpush.msra.mxu0 0.0
    %1565 = vmatpush.msra.mxu0 0.0
    %1566 = vmatpush.msra.mxu0 0.0
    %1567 = vmatpush.msra.mxu0 0.0
    %1568 = vmatpush.msra.mxu0 0.0
    %1569 = vmatpush.msra.mxu0 0.0
    %1570 = vmatpush.msra.mxu0 %v1210
    %1571 = vmatpush.msra.mxu0 %v1208
    %1572 = vmatpush.msra.mxu0 %v1206
    %1573 = vmatpush.msra.mxu0 %v1204
    %1574 = vmatpush.msra.mxu0 %v1202
    %1575 = vmatpush.msra.mxu0 %v1200
    %1576 = vmatpush.msra.mxu0 %v1198
    %1577 = vmatpush.msra.mxu0 %v1196
    %1578 = vmatmul.f32.gmra.mxu0 %v1540
    %v1579 = vpop.f32.mrf.mxu0
    %v1580 = vadd.f32 0.0, %v1579
    %1581 = vdwg.mxu0
    %v1584 = vrot.slane %v1560, 2
    %v1585 = vrot.slane %v1580, 2
    %v1588 = vadd.f32 %v1536, %v1584
    %v1589 = vadd.f32 %v1537, %v1585
    %v1590 = vxor.u32 %v1588, 2147483648
    %v1591 = vxor.u32 %v1589, 2147483648
    %v1592 = vmul.f32 %v1590, 1.442695
    %v1593 = vpow.pop %v1592
    %v1594 = vmul.f32 %v1591, 1.442695
    %v1595 = vpow.pop %v1594
    %v1596 = vadd.f32 %v1593, 1.0
    %v1597 = vadd.f32 %v1595, 1.0
    %v1598 = vrcp.pop %v1596
    %v1599 = vmul.f32 %v1596, %v1598
    %v1600 = vsub.f32 1.0, %v1599
    %v1601 = vmul.f32 %v1598, %v1600
    %v1602 = vadd.f32 %v1598, %v1601
    %vm1603 = vweird.f32 %v1596
    %vm1604 = vweird.f32 %v1598
    %vm1605 = vmor %vm1603, %vm1604
    %v1606 = vsel %vm1605, %v1598, %v1602
    %v1607 = vand.u32 2147483647, %v1596
    %vm1608 = vcmp.eq.f32.partialorder %v1607, 8.507059e+37
    %v1609 = vand.u32 %v1596, 2147483648
    %v1610 = vor.u32 1.1754944e-38, %v1609
    %v1611 = vsel %vm1608, %v1610, %v1606
    %v1612 = vmul.f32 1.0, %v1611
    %v1613 = vrcp.pop %v1597
    %v1614 = vmul.f32 %v1597, %v1613
    %v1615 = vsub.f32 1.0, %v1614
    %v1616 = vmul.f32 %v1613, %v1615
    %v1617 = vadd.f32 %v1613, %v1616
    %vm1618 = vweird.f32 %v1597
    %vm1619 = vweird.f32 %v1613
    %vm1620 = vmor %vm1618, %vm1619
    %v1621 = vsel %vm1620, %v1613, %v1617
    %v1622 = vand.u32 2147483647, %v1597
    %vm1623 = vcmp.eq.f32.partialorder %v1622, 8.507059e+37
    %v1624 = vand.u32 %v1597, 2147483648
    %v1625 = vor.u32 1.1754944e-38, %v1624
    %v1626 = vsel %vm1623, %v1625, %v1621
    %v1627 = vmul.f32 1.0, %v1626
    %v1628 = vtanh.pop %v1589
    %v1630 = vrot.slane %v1529, 6
    %v1632 = vmul.f32 %v1612, %v1630
    %1634 = vrot.lane.b32.xlu0 %v1628, 64
    %v1635 = vpop.permute.xlu0 %1634
    %v1637 = vmul.f32 %v1612, %v1635
    %1639 = vrot.lane.b32.xlu0 %v1637, 64
    %v1640 = vpop.permute.xlu0 %1639
    %v1642 = vadd.f32 %v1632, %v1640
    %v1643 = vtanh.pop %v1642
    %1645 = vrot.lane.b32.xlu0 %v1643, 64
    %v1646 = vpop.permute.xlu0 %1645
    %v1648 = vmul.f32 %v1627, %v1646
    %v1649 = vld [vmem:[#allocation3 + $0x10] sm:$0x3]
    %v1650 = vld [vmem:[#allocation3 + $0x18] sm:$0x3]
    %v1652 = vrot.slane %v1648, 6
    %v1653 = vsel %vm171, %v1652, 0
    %1655 = vmatpush.msra.mxu0 0.0
    %1656 = vmatpush.msra.mxu0 0.0
    %1657 = vmatpush.msra.mxu0 0.0
    %1658 = vmatpush.msra.mxu0 0.0
    %1659 = vmatpush.msra.mxu0 0.0
    %1660 = vmatpush.msra.mxu0 0.0
    %1661 = vmatpush.msra.mxu0 0.0
    %1662 = vmatpush.msra.mxu0 0.0
    %1663 = vmatpush.msra.mxu0 %v1209
    %1664 = vmatpush.msra.mxu0 %v1207
    %1665 = vmatpush.msra.mxu0 %v1205
    %1666 = vmatpush.msra.mxu0 %v1203
    %1667 = vmatpush.msra.mxu0 %v1201
    %1668 = vmatpush.msra.mxu0 %v1199
    %1669 = vmatpush.msra.mxu0 %v1197
    %1670 = vmatpush.msra.mxu0 %v1195
    %1671 = vmatmul.f32.gmra.mxu0 %v1653
    %v1672 = vpop.f32.mrf.mxu0
    %v1673 = vadd.f32 0.0, %v1672
    %1674 = vdwg.mxu0
    %1675 = vmatpush.msra.mxu0 0.0
    %1676 = vmatpush.msra.mxu0 0.0
    %1677 = vmatpush.msra.mxu0 0.0
    %1678 = vmatpush.msra.mxu0 0.0
    %1679 = vmatpush.msra.mxu0 0.0
    %1680 = vmatpush.msra.mxu0 0.0
    %1681 = vmatpush.msra.mxu0 0.0
    %1682 = vmatpush.msra.mxu0 0.0
    %1683 = vmatpush.msra.mxu0 %v1210
    %1684 = vmatpush.msra.mxu0 %v1208
    %1685 = vmatpush.msra.mxu0 %v1206
    %1686 = vmatpush.msra.mxu0 %v1204
    %1687 = vmatpush.msra.mxu0 %v1202
    %1688 = vmatpush.msra.mxu0 %v1200
    %1689 = vmatpush.msra.mxu0 %v1198
    %1690 = vmatpush.msra.mxu0 %v1196
    %1691 = vmatmul.f32.gmra.mxu0 %v1653
    %v1692 = vpop.f32.mrf.mxu0
    %v1693 = vadd.f32 0.0, %v1692
    %1694 = vdwg.mxu0
    %v1695 = vadd.f32 %v1649, %v1673
    %v1696 = vadd.f32 %v1650, %v1693
    %v1697 = vxor.u32 %v1695, 2147483648
    %v1698 = vxor.u32 %v1696, 2147483648
    %v1699 = vmul.f32 %v1697, 1.442695
    %v1700 = vpow.pop %v1699
    %v1701 = vmul.f32 %v1698, 1.442695
    %v1702 = vpow.pop %v1701
    %v1703 = vadd.f32 %v1700, 1.0
    %v1704 = vadd.f32 %v1702, 1.0
    %v1705 = vrcp.pop %v1703
    %v1706 = vmul.f32 %v1703, %v1705
    %v1707 = vsub.f32 1.0, %v1706
    %v1708 = vmul.f32 %v1705, %v1707
    %v1709 = vadd.f32 %v1705, %v1708
    %vm1710 = vweird.f32 %v1703
    %vm1711 = vweird.f32 %v1705
    %vm1712 = vmor %vm1710, %vm1711
    %v1713 = vsel %vm1712, %v1705, %v1709
    %v1714 = vand.u32 2147483647, %v1703
    %vm1715 = vcmp.eq.f32.partialorder %v1714, 8.507059e+37
    %v1716 = vand.u32 %v1703, 2147483648
    %v1717 = vor.u32 1.1754944e-38, %v1716
    %v1718 = vsel %vm1715, %v1717, %v1713
    %v1719 = vmul.f32 1.0, %v1718
    %v1720 = vrcp.pop %v1704
    %v1721 = vmul.f32 %v1704, %v1720
    %v1722 = vsub.f32 1.0, %v1721
    %v1723 = vmul.f32 %v1720, %v1722
    %v1724 = vadd.f32 %v1720, %v1723
    %vm1725 = vweird.f32 %v1704
    %vm1726 = vweird.f32 %v1720
    %vm1727 = vmor %vm1725, %vm1726
    %v1728 = vsel %vm1727, %v1720, %v1724
    %v1729 = vand.u32 2147483647, %v1704
    %vm1730 = vcmp.eq.f32.partialorder %v1729, 8.507059e+37
    %v1731 = vand.u32 %v1704, 2147483648
    %v1732 = vor.u32 1.1754944e-38, %v1731
    %v1733 = vsel %vm1730, %v1732, %v1728
    %v1734 = vmul.f32 1.0, %v1733
    %v1735 = vtanh.pop %v1696
    %v1737 = vrot.slane %v1642, 6
    %v1739 = vmul.f32 %v1719, %v1737
    %1741 = vrot.lane.b32.xlu0 %v1735, 64
    %v1742 = vpop.permute.xlu0 %1741
    %v1744 = vmul.f32 %v1719, %v1742
    %1746 = vrot.lane.b32.xlu0 %v1744, 64
    %v1747 = vpop.permute.xlu0 %1746
    %v1749 = vadd.f32 %v1739, %v1747
    %v1750 = vtanh.pop %v1749
    %1752 = vrot.lane.b32.xlu0 %v1750, 64
    %v1753 = vpop.permute.xlu0 %1752
    %v1755 = vmul.f32 %v1734, %v1753
    %v1756 = vld [vmem:[#allocation3 + $0x10] sm:$0xc]
    %v1757 = vld [vmem:[#allocation3 + $0x18] sm:$0xc]
    %v1759 = vsel %vm171, %v1755, 0
    %1761 = vmatpush.msra.mxu0 0.0
    %1762 = vmatpush.msra.mxu0 0.0
    %1763 = vmatpush.msra.mxu0 0.0
    %1764 = vmatpush.msra.mxu0 0.0
    %1765 = vmatpush.msra.mxu0 0.0
    %1766 = vmatpush.msra.mxu0 0.0
    %1767 = vmatpush.msra.mxu0 0.0
    %1768 = vmatpush.msra.mxu0 0.0
    %1769 = vmatpush.msra.mxu0 %v1209
    %1770 = vmatpush.msra.mxu0 %v1207
    %1771 = vmatpush.msra.mxu0 %v1205
    %1772 = vmatpush.msra.mxu0 %v1203
    %1773 = vmatpush.msra.mxu0 %v1201
    %1774 = vmatpush.msra.mxu0 %v1199
    %1775 = vmatpush.msra.mxu0 %v1197
    %1776 = vmatpush.msra.mxu0 %v1195
    %1777 = vmatmul.f32.gmra.mxu0 %v1759
    %v1778 = vpop.f32.mrf.mxu0
    %v1779 = vadd.f32 0.0, %v1778
    %1780 = vdwg.mxu0
    %1781 = vmatpush.msra.mxu0 0.0
    %1782 = vmatpush.msra.mxu0 0.0
    %1783 = vmatpush.msra.mxu0 0.0
    %1784 = vmatpush.msra.mxu0 0.0
    %1785 = vmatpush.msra.mxu0 0.0
    %1786 = vmatpush.msra.mxu0 0.0
    %1787 = vmatpush.msra.mxu0 0.0
    %1788 = vmatpush.msra.mxu0 0.0
    %1789 = vmatpush.msra.mxu0 %v1210
    %1790 = vmatpush.msra.mxu0 %v1208
    %1791 = vmatpush.msra.mxu0 %v1206
    %1792 = vmatpush.msra.mxu0 %v1204
    %1793 = vmatpush.msra.mxu0 %v1202
    %1794 = vmatpush.msra.mxu0 %v1200
    %1795 = vmatpush.msra.mxu0 %v1198
    %1796 = vmatpush.msra.mxu0 %v1196
    %1797 = vmatmul.f32.gmra.mxu0 %v1759
    %v1798 = vpop.f32.mrf.mxu0
    %v1799 = vadd.f32 0.0, %v1798
    %1800 = vdwg.mxu0
    %v1803 = vrot.slane %v1779, 6
    %v1804 = vrot.slane %v1799, 6
    %v1807 = vadd.f32 %v1756, %v1803
    %v1808 = vadd.f32 %v1757, %v1804
    %v1809 = vxor.u32 %v1807, 2147483648
    %v1810 = vxor.u32 %v1808, 2147483648
    %v1811 = vmul.f32 %v1809, 1.442695
    %v1812 = vpow.pop %v1811
    %v1813 = vmul.f32 %v1810, 1.442695
    %v1814 = vpow.pop %v1813
    %v1815 = vadd.f32 %v1812, 1.0
    %v1816 = vadd.f32 %v1814, 1.0
    %v1817 = vrcp.pop %v1815
    %v1818 = vmul.f32 %v1815, %v1817
    %v1819 = vsub.f32 1.0, %v1818
    %v1820 = vmul.f32 %v1817, %v1819
    %v1821 = vadd.f32 %v1817, %v1820
    %vm1822 = vweird.f32 %v1815
    %vm1823 = vweird.f32 %v1817
    %vm1824 = vmor %vm1822, %vm1823
    %v1825 = vsel %vm1824, %v1817, %v1821
    %v1826 = vand.u32 2147483647, %v1815
    %vm1827 = vcmp.eq.f32.partialorder %v1826, 8.507059e+37
    %v1828 = vand.u32 %v1815, 2147483648
    %v1829 = vor.u32 1.1754944e-38, %v1828
    %v1830 = vsel %vm1827, %v1829, %v1825
    %v1831 = vmul.f32 1.0, %v1830
    %v1832 = vrcp.pop %v1816
    %v1833 = vmul.f32 %v1816, %v1832
    %v1834 = vsub.f32 1.0, %v1833
    %v1835 = vmul.f32 %v1832, %v1834
    %v1836 = vadd.f32 %v1832, %v1835
    %vm1837 = vweird.f32 %v1816
    %vm1838 = vweird.f32 %v1832
    %vm1839 = vmor %vm1837, %vm1838
    %v1840 = vsel %vm1839, %v1832, %v1836
    %v1841 = vand.u32 2147483647, %v1816
    %vm1842 = vcmp.eq.f32.partialorder %v1841, 8.507059e+37
    %v1843 = vand.u32 %v1816, 2147483648
    %v1844 = vor.u32 1.1754944e-38, %v1843
    %v1845 = vsel %vm1842, %v1844, %v1840
    %v1846 = vmul.f32 1.0, %v1845
    %v1847 = vtanh.pop %v1808
    %v1849 = vrot.slane %v1749, 6
    %v1851 = vmul.f32 %v1831, %v1849
    %1853 = vrot.lane.b32.xlu0 %v1847, 64
    %v1854 = vpop.permute.xlu0 %1853
    %v1856 = vmul.f32 %v1831, %v1854
    %1858 = vrot.lane.b32.xlu0 %v1856, 64
    %v1859 = vpop.permute.xlu0 %1858
    %v1861 = vadd.f32 %v1851, %v1859
    %v1862 = vtanh.pop %v1861
    %1864 = vrot.lane.b32.xlu0 %v1862, 64
    %v1865 = vpop.permute.xlu0 %1864
    %v1867 = vmul.f32 %v1846, %v1865
    %v1868 = vld [vmem:[#allocation3 + $0x10] sm:$0x30]
    %v1869 = vld [vmem:[#allocation3 + $0x18] sm:$0x30]
    %v1871 = vrot.slane %v1867, 2
    %v1872 = vsel %vm171, %v1871, 0
    %1874 = vmatpush.msra.mxu0 0.0
    %1875 = vmatpush.msra.mxu0 0.0
    %1876 = vmatpush.msra.mxu0 0.0
    %1877 = vmatpush.msra.mxu0 0.0
    %1878 = vmatpush.msra.mxu0 0.0
    %1879 = vmatpush.msra.mxu0 0.0
    %1880 = vmatpush.msra.mxu0 0.0
    %1881 = vmatpush.msra.mxu0 0.0
    %1882 = vmatpush.msra.mxu0 %v1209
    %1883 = vmatpush.msra.mxu0 %v1207
    %1884 = vmatpush.msra.mxu0 %v1205
    %1885 = vmatpush.msra.mxu0 %v1203
    %1886 = vmatpush.msra.mxu0 %v1201
    %1887 = vmatpush.msra.mxu0 %v1199
    %1888 = vmatpush.msra.mxu0 %v1197
    %1889 = vmatpush.msra.mxu0 %v1195
    %1890 = vmatmul.f32.gmra.mxu0 %v1872
    %v1891 = vpop.f32.mrf.mxu0
    %v1892 = vadd.f32 0.0, %v1891
    %1893 = vdwg.mxu0
    %1894 = vmatpush.msra.mxu0 0.0
    %1895 = vmatpush.msra.mxu0 0.0
    %1896 = vmatpush.msra.mxu0 0.0
    %1897 = vmatpush.msra.mxu0 0.0
    %1898 = vmatpush.msra.mxu0 0.0
    %1899 = vmatpush.msra.mxu0 0.0
    %1900 = vmatpush.msra.mxu0 0.0
    %1901 = vmatpush.msra.mxu0 0.0
    %1902 = vmatpush.msra.mxu0 %v1210
    %1903 = vmatpush.msra.mxu0 %v1208
    %1904 = vmatpush.msra.mxu0 %v1206
    %1905 = vmatpush.msra.mxu0 %v1204
    %1906 = vmatpush.msra.mxu0 %v1202
    %1907 = vmatpush.msra.mxu0 %v1200
    %1908 = vmatpush.msra.mxu0 %v1198
    %1909 = vmatpush.msra.mxu0 %v1196
    %1910 = vmatmul.f32.gmra.mxu0 %v1872
    %v1911 = vpop.f32.mrf.mxu0
    %v1912 = vadd.f32 0.0, %v1911
    %1913 = vdwg.mxu0
    %v1916 = vrot.slane %v1892, 4
    %v1917 = vrot.slane %v1912, 4
    %v1920 = vadd.f32 %v1868, %v1916
    %v1921 = vadd.f32 %v1869, %v1917
    %v1922 = vxor.u32 %v1920, 2147483648
    %v1923 = vxor.u32 %v1921, 2147483648
    %v1924 = vmul.f32 %v1922, 1.442695
    %v1925 = vpow.pop %v1924
    %v1926 = vmul.f32 %v1923, 1.442695
    %v1927 = vpow.pop %v1926
    %v1928 = vadd.f32 %v1925, 1.0
    %v1929 = vadd.f32 %v1927, 1.0
    %v1930 = vrcp.pop %v1928
    %v1931 = vmul.f32 %v1928, %v1930
    %v1932 = vsub.f32 1.0, %v1931
    %v1933 = vmul.f32 %v1930, %v1932
    %v1934 = vadd.f32 %v1930, %v1933
    %vm1935 = vweird.f32 %v1928
    %vm1936 = vweird.f32 %v1930
    %vm1937 = vmor %vm1935, %vm1936
    %v1938 = vsel %vm1937, %v1930, %v1934
    %v1939 = vand.u32 2147483647, %v1928
    %vm1940 = vcmp.eq.f32.partialorder %v1939, 8.507059e+37
    %v1941 = vand.u32 %v1928, 2147483648
    %v1942 = vor.u32 1.1754944e-38, %v1941
    %v1943 = vsel %vm1940, %v1942, %v1938
    %v1944 = vmul.f32 1.0, %v1943
    %v1945 = vrcp.pop %v1929
    %v1946 = vmul.f32 %v1929, %v1945
    %v1947 = vsub.f32 1.0, %v1946
    %v1948 = vmul.f32 %v1945, %v1947
    %v1949 = vadd.f32 %v1945, %v1948
    %vm1950 = vweird.f32 %v1929
    %vm1951 = vweird.f32 %v1945
    %vm1952 = vmor %vm1950, %vm1951
    %v1953 = vsel %vm1952, %v1945, %v1949
    %v1954 = vand.u32 2147483647, %v1929
    %vm1955 = vcmp.eq.f32.partialorder %v1954, 8.507059e+37
    %v1956 = vand.u32 %v1929, 2147483648
    %v1957 = vor.u32 1.1754944e-38, %v1956
    %v1958 = vsel %vm1955, %v1957, %v1953
    %v1959 = vmul.f32 1.0, %v1958
    %v1960 = vtanh.pop %v1921
    %v1962 = vrot.slane %v1861, 6
    %v1964 = vmul.f32 %v1944, %v1962
    %1966 = vrot.lane.b32.xlu0 %v1960, 64
    %v1967 = vpop.permute.xlu0 %1966
    %v1969 = vmul.f32 %v1944, %v1967
    %1971 = vrot.lane.b32.xlu0 %v1969, 64
    %v1972 = vpop.permute.xlu0 %1971
    %v1974 = vadd.f32 %v1964, %v1972
    %v1975 = vtanh.pop %v1974
    %1977 = vrot.lane.b32.xlu0 %v1975, 64
    %v1978 = vpop.permute.xlu0 %1977
    %v1980 = vmul.f32 %v1959, %v1978
    %v1981 = vld [vmem:[#allocation3 + $0x10] sm:$0xc0]
    %v1982 = vld [vmem:[#allocation3 + $0x18] sm:$0xc0]
    %v1984 = vrot.slane %v1980, 4
    %v1985 = vsel %vm171, %v1984, 0
    %1987 = vmatpush.msra.mxu0 0.0
    %1988 = vmatpush.msra.mxu0 0.0
    %1989 = vmatpush.msra.mxu0 0.0
    %1990 = vmatpush.msra.mxu0 0.0
    %1991 = vmatpush.msra.mxu0 0.0
    %1992 = vmatpush.msra.mxu0 0.0
    %1993 = vmatpush.msra.mxu0 0.0
    %1994 = vmatpush.msra.mxu0 0.0
    %1995 = vmatpush.msra.mxu0 %v1209
    %1996 = vmatpush.msra.mxu0 %v1207
    %1997 = vmatpush.msra.mxu0 %v1205
    %1998 = vmatpush.msra.mxu0 %v1203
    %1999 = vmatpush.msra.mxu0 %v1201
    %2000 = vmatpush.msra.mxu0 %v1199
    %2001 = vmatpush.msra.mxu0 %v1197
    %2002 = vmatpush.msra.mxu0 %v1195
    %2003 = vmatmul.f32.gmra.mxu0 %v1985
    %v2004 = vpop.f32.mrf.mxu0
    %v2005 = vadd.f32 0.0, %v2004
    %2006 = vdwg.mxu0
    %2007 = vmatpush.msra.mxu0 0.0
    %2008 = vmatpush.msra.mxu0 0.0
    %2009 = vmatpush.msra.mxu0 0.0
    %2010 = vmatpush.msra.mxu0 0.0
    %2011 = vmatpush.msra.mxu0 0.0
    %2012 = vmatpush.msra.mxu0 0.0
    %2013 = vmatpush.msra.mxu0 0.0
    %2014 = vmatpush.msra.mxu0 0.0
    %2015 = vmatpush.msra.mxu0 %v1210
    %2016 = vmatpush.msra.mxu0 %v1208
    %2017 = vmatpush.msra.mxu0 %v1206
    %2018 = vmatpush.msra.mxu0 %v1204
    %2019 = vmatpush.msra.mxu0 %v1202
    %2020 = vmatpush.msra.mxu0 %v1200
    %2021 = vmatpush.msra.mxu0 %v1198
    %2022 = vmatpush.msra.mxu0 %v1196
    %2023 = vmatmul.f32.gmra.mxu0 %v1985
    %v2024 = vpop.f32.mrf.mxu0
    %v2025 = vadd.f32 0.0, %v2024
    %2026 = vdwg.mxu0
    %v2029 = vrot.slane %v2005, 2
    %v2030 = vrot.slane %v2025, 2
    %v2033 = vadd.f32 %v1981, %v2029
    %v2034 = vadd.f32 %v1982, %v2030
    %v2035 = vxor.u32 %v2033, 2147483648
    %v2036 = vxor.u32 %v2034, 2147483648
    %v2037 = vmul.f32 %v2035, 1.442695
    %v2038 = vpow.pop %v2037
    %v2039 = vmul.f32 %v2036, 1.442695
    %v2040 = vpow.pop %v2039
    %v2041 = vadd.f32 %v2038, 1.0
    %v2042 = vadd.f32 %v2040, 1.0
    %v2043 = vrcp.pop %v2041
    %v2044 = vmul.f32 %v2041, %v2043
    %v2045 = vsub.f32 1.0, %v2044
    %v2046 = vmul.f32 %v2043, %v2045
    %v2047 = vadd.f32 %v2043, %v2046
    %vm2048 = vweird.f32 %v2041
    %vm2049 = vweird.f32 %v2043
    %vm2050 = vmor %vm2048, %vm2049
    %v2051 = vsel %vm2050, %v2043, %v2047
    %v2052 = vand.u32 2147483647, %v2041
    %vm2053 = vcmp.eq.f32.partialorder %v2052, 8.507059e+37
    %v2054 = vand.u32 %v2041, 2147483648
    %v2055 = vor.u32 1.1754944e-38, %v2054
    %v2056 = vsel %vm2053, %v2055, %v2051
    %v2057 = vmul.f32 1.0, %v2056
    %v2058 = vrcp.pop %v2042
    %v2059 = vmul.f32 %v2042, %v2058
    %v2060 = vsub.f32 1.0, %v2059
    %v2061 = vmul.f32 %v2058, %v2060
    %v2062 = vadd.f32 %v2058, %v2061
    %vm2063 = vweird.f32 %v2042
    %vm2064 = vweird.f32 %v2058
    %vm2065 = vmor %vm2063, %vm2064
    %v2066 = vsel %vm2065, %v2058, %v2062
    %v2067 = vand.u32 2147483647, %v2042
    %vm2068 = vcmp.eq.f32.partialorder %v2067, 8.507059e+37
    %v2069 = vand.u32 %v2042, 2147483648
    %v2070 = vor.u32 1.1754944e-38, %v2069
    %v2071 = vsel %vm2068, %v2070, %v2066
    %v2072 = vmul.f32 1.0, %v2071
    %v2073 = vtanh.pop %v2034
    %v2075 = vrot.slane %v1974, 6
    %v2077 = vmul.f32 %v2057, %v2075
    %2079 = vrot.lane.b32.xlu0 %v2073, 64
    %v2080 = vpop.permute.xlu0 %2079
    %v2082 = vmul.f32 %v2057, %v2080
    %2084 = vrot.lane.b32.xlu0 %v2082, 64
    %v2085 = vpop.permute.xlu0 %2084
    %v2087 = vadd.f32 %v2077, %v2085
    %v2088 = vtanh.pop %v2087
    %2090 = vrot.lane.b32.xlu0 %v2088, 64
    %v2091 = vpop.permute.xlu0 %2090
    %v2093 = vmul.f32 %v2072, %v2091
    %v2094 = vadd.f32 %v1098, 0.0
    %2095 = vrot.lane.b32.xlu0 %v1098, 96
    %v2096 = vpop.permute.xlu0 %2095
    %v2098 = vadd.f32 %v2094, %v2096
    %v2099 = vmul.f32 %v2098, 0.5
    %v2100 = vadd.f32 %v2093, 0.0
    %2102 = vrot.lane.b32.xlu0 %v2093, 96
    %v2103 = vpop.permute.xlu0 %2102
    %v2105 = vadd.f32 %v2100, %v2103
    %v2106 = vmul.f32 %v2105, 0.5
    %v2107 = vld [vmem:[%s7] sm:$0xff]
    %v2108 = vld [vmem:[%s7 + $0x8] sm:$0xff]
    %v2109 = vld [vmem:[%s7 + $0x10] sm:$0xff]
    %v2110 = vld [vmem:[%s7 + $0x18] sm:$0xff]
    %v2111 = vld [vmem:[%s7 + $0x20] sm:$0xff]
    %v2112 = vld [vmem:[%s7 + $0x28] sm:$0xff]
    %v2113 = vld [vmem:[%s7 + $0x30] sm:$0xff]
    %v2114 = vld [vmem:[%s7 + $0x38] sm:$0xff]
    %v2116 = vrot.slane %v2106, 6
    %vm2117 = vcmask 261120
    %v2118 = vsel %vm2117, %v2116, 0
    %2120 = vmatpush.msra.mxu0 0.0
    %2121 = vmatpush.msra.mxu0 0.0
    %2122 = vmatpush.msra.mxu0 0.0
    %2123 = vmatpush.msra.mxu0 0.0
    %2124 = vmatpush.msra.mxu0 0.0
    %2125 = vmatpush.msra.mxu0 0.0
    %2126 = vmatpush.msra.mxu0 0.0
    %2127 = vmatpush.msra.mxu0 0.0
    %2128 = vmatpush.msra.mxu0 0.0
    %2129 = vmatpush.msra.mxu0 0.0
    %2130 = vmatpush.msra.mxu0 0.0
    %2131 = vmatpush.msra.mxu0 0.0
    %2132 = vmatpush.msra.mxu0 %v2114
    %2133 = vmatpush.msra.mxu0 %v2113
    %2134 = vmatpush.msra.mxu0 %v2112
    %2135 = vmatpush.msra.mxu0 %v2111
    %2136 = vmatmul.f32.gmra.mxu0 %v2118
    %v2137 = vpop.f32.mrf.mxu0
    %v2138 = vadd.f32 0.0, %v2137
    %2139 = vdwg.mxu0
    %v2141 = vrot.slane %v2099, 6
    %v2142 = vsel %vm2117, %v2141, 0
    %2144 = vmatpush.msra.mxu0 0.0
    %2145 = vmatpush.msra.mxu0 0.0
    %2146 = vmatpush.msra.mxu0 0.0
    %2147 = vmatpush.msra.mxu0 0.0
    %2148 = vmatpush.msra.mxu0 0.0
    %2149 = vmatpush.msra.mxu0 0.0
    %2150 = vmatpush.msra.mxu0 0.0
    %2151 = vmatpush.msra.mxu0 0.0
    %2152 = vmatpush.msra.mxu0 0.0
    %2153 = vmatpush.msra.mxu0 0.0
    %2154 = vmatpush.msra.mxu0 0.0
    %2155 = vmatpush.msra.mxu0 0.0
    %2156 = vmatpush.msra.mxu0 %v2110
    %2157 = vmatpush.msra.mxu0 %v2109
    %2158 = vmatpush.msra.mxu0 %v2108
    %2159 = vmatpush.msra.mxu0 %v2107
    %2160 = vmatmul.f32.gmra.mxu0 %v2142
    %v2161 = vpop.f32.mrf.mxu0
    %v2162 = vadd.f32 %v2138, %v2161
    %2163 = vdwg.mxu0
    %v2164 = vld [vmem:[%s8] sm:$0x1]
    %v2166 = vperm.slane %v2164, 0
    %v2168 = vadd.f32 %v2162, %v2166
    %v2169 = vmax.f32 %v2168, 0.0
    %v2170 = vld [vmem:[%s9] sm:$0xff]
    %v2171 = vld [vmem:[%s9 + $0x8] sm:$0xff]
    %v2172 = vld [vmem:[%s9 + $0x10] sm:$0xff]
    %v2173 = vld [vmem:[%s9 + $0x18] sm:$0xff]
    %v2174 = vld [vmem:[%s10] sm:$0x1]
    %v2176 = vperm.slane %v2174, 0
    %v2179 = vsel %vm2117, %v2169, 0
    %2181 = vmatpush.msra.mxu0 0.0
    %2182 = vmatpush.msra.mxu0 0.0
    %2183 = vmatpush.msra.mxu0 0.0
    %2184 = vmatpush.msra.mxu0 0.0
    %2185 = vmatpush.msra.mxu0 0.0
    %2186 = vmatpush.msra.mxu0 0.0
    %2187 = vmatpush.msra.mxu0 0.0
    %2188 = vmatpush.msra.mxu0 0.0
    %2189 = vmatpush.msra.mxu0 0.0
    %2190 = vmatpush.msra.mxu0 0.0
    %2191 = vmatpush.msra.mxu0 0.0
    %2192 = vmatpush.msra.mxu0 0.0
    %2193 = vmatpush.msra.mxu0 %v2173
    %2194 = vmatpush.msra.mxu0 %v2172
    %2195 = vmatpush.msra.mxu0 %v2171
    %2196 = vmatpush.msra.mxu0 %v2170
    %2197 = vmatmul.f32.gmra.mxu0 %v2179
    %v2198 = vpop.f32.mrf.mxu0
    %v2199 = vadd.f32 %v2176, %v2198
    %2200 = vdwg.mxu0
    %vm2201 = vcmask 25600
    %2202 = vst.msk [vmem:[#allocation10] sm:$0x3] %vm2201, %v2199
    // Predicated region
    $region58: #{tpu_custom_call.1} parent=1 // pred_check
      _
    $region59: #{tpu_custom_call.1} parent=1 // pred_check_branch
      %2204 = sbr.rel (0) target = $region61
    $region60: #{tpu_custom_call.1} parent=1 // pred_region
      %2206 = vsyncadd [#allocation6], 0
      %s2208 = sshll.u32 [#allocation10], 4
      %s2209 = int_to_ptr.vmem [resolvable:$true] %s2208
      %s2210 = sshll.u32 %s11, 4
      %s2211 = int_to_ptr.hbm [resolvable:$true] %s2210
      %2213 = dma.vmem_to_hbm [thread:$0]  %s2209, 32, %s2211, [#allocation6]
    $region61: #{tpu_custom_call.1} parent=1 // pred_fallthru
      _
    // Predicated region
    $region62: #{tpu_custom_call.1} parent=1 // pred_check
      _
    $region63: #{tpu_custom_call.1} parent=1 // pred_check_branch
      %2215 = sbr.rel (0) target = $region65
    $region64: #{tpu_custom_call.1} parent=1 // pred_region
      %2217 = dma.done [#allocation6], 32
    $region65: #{tpu_custom_call.1} parent=1 // pred_fallthru
      _
    %2218 = vsyncpa [#allocation5], 1
    %2219 = vsyncpa [#allocation8], 1
    %2220 = vsyncpa [#allocation6], 1

</llo_original>
